<compile_context>
chip_gen: v6e
topology: v6e:2x2x1
jax: 0.10.0
libtpu: 0.0.40
codegen_flags: <defaults>
</compile_context>

<pallas_src>
import functools
import math

import jax
import jax.numpy as jnp
from jax.experimental import pallas as pl
from jax.experimental.pallas import tpu as pltpu


def _layernorm(y, gamma, beta, eps=1e-5):
    # fused single-pass mean / variance (E[x], E[x^2])
    mu = jnp.mean(y, axis=-1, keepdims=True)
    mu2 = jnp.mean(y * y, axis=-1, keepdims=True)
    var = mu2 - mu * mu
    return (y - mu) * jax.lax.rsqrt(var + eps) * gamma + beta


def _decoder_block_kernel(n_heads,
                          xq_ref,     # (TQ, D) f32  : query rows + residual
                          xkv_ref,    # (S,  D) f32  : full sequence for K/V
                          wq_ref, wk_ref, wv_ref,      # (D, D) bf16
                          bq_ref, bk_ref, bv_ref,      # (1, D) f32
                          wo_ref, bo_ref,              # (D, D) bf16, (1, D) f32
                          g1_ref, be1_ref,             # (1, D) f32
                          w1_ref, b1_ref,              # (D, F) bf16, (1, F) f32
                          w2_ref, b2_ref,              # (F, D) bf16, (1, D) f32
                          g2_ref, be2_ref,             # (1, D) f32
                          o_ref):                      # (TQ, D) f32
    xq = xq_ref[...]                      # (TQ, D) f32
    xkv = xkv_ref[...]                    # (S, D)  f32
    tq, d_model = xq.shape
    s_len = xkv.shape[0]
    head_dim = d_model // n_heads
    scale = 1.0 / math.sqrt(head_dim)

    xq_b = xq.astype(jnp.bfloat16)
    xkv_b = xkv.astype(jnp.bfloat16)

    # --- projections (bf16 MXU, f32 accumulate) ---
    q = jnp.dot(xq_b, wq_ref[...], preferred_element_type=jnp.float32) + bq_ref[...]
    k = jnp.dot(xkv_b, wk_ref[...], preferred_element_type=jnp.float32) + bk_ref[...]
    v = jnp.dot(xkv_b, wv_ref[...], preferred_element_type=jnp.float32) + bv_ref[...]

    # fold 1/sqrt(head_dim) into q (TQ*D multiplies instead of H*TQ*S)
    q = q * scale

    # heads -> batch axis of a batched matmul (no lane slicing / concatenate)
    qh = jnp.transpose(q.reshape(tq, n_heads, head_dim).astype(jnp.bfloat16), (1, 0, 2))
    kh = jnp.transpose(k.reshape(s_len, n_heads, head_dim).astype(jnp.bfloat16), (1, 0, 2))
    vh = jnp.transpose(v.reshape(s_len, n_heads, head_dim).astype(jnp.bfloat16), (1, 0, 2))

    s = jnp.einsum('hqd,hkd->hqk', qh, kh,
                   preferred_element_type=jnp.float32)          # (H, TQ, S) f32

    # softmax in f32; reciprocal goes to the EUP slot
    m = jnp.max(s, axis=-1, keepdims=True)
    p = jnp.exp(s - m)
    denom = jnp.sum(p, axis=-1, keepdims=True)
    p = p * pl.reciprocal(denom, approx=True)

    ctx = jnp.einsum('hqk,hkd->hqd', p.astype(jnp.bfloat16), vh,
                     preferred_element_type=jnp.float32)        # (H, TQ, hd) f32
    ctx = jnp.transpose(ctx, (1, 0, 2)).reshape(tq, d_model)     # (TQ, D)

    attn = jnp.dot(ctx.astype(jnp.bfloat16), wo_ref[...],
                   preferred_element_type=jnp.float32) + bo_ref[...]

    # residual + LayerNorm 1 (dropout == identity in eval)
    y = _layernorm(xq + attn, g1_ref[...], be1_ref[...])

    # --- feed forward: Linear -> ReLU -> Linear (bf16 MXU, f32 accumulate) ---
    h1 = jnp.dot(y.astype(jnp.bfloat16), w1_ref[...],
                 preferred_element_type=jnp.float32) + b1_ref[...]
    h1 = jnp.maximum(h1, 0.0)
    ff = jnp.dot(h1.astype(jnp.bfloat16), w2_ref[...],
                 preferred_element_type=jnp.float32) + b2_ref[...]

    # residual + LayerNorm 2
    o_ref[...] = _layernorm(y + ff, g2_ref[...], be2_ref[...])


def decoder_block(x_sbd, params, n_heads):
    """x_sbd: (S, B, D) float32 — matches PyTorch (batch_first=False)."""
    S, B, D = x_sbd.shape
    F = params["w1"].shape[-1]
    TQ = S if S <= 128 else 128          # query-tile rows (multiple of 8 / full S)
    assert S % TQ == 0 and D % n_heads == 0

    # NOTE: direct (S, B, D) blocks would need a second-to-last block dim of 1
    # (< 8 and != B) which violates the TPU block tiling rule at small B, so the
    # batch-major relayout stays outside the kernel.
    x = jnp.transpose(x_sbd, (1, 0, 2))              # (B, S, D)

    bf = lambda w: w.astype(jnp.bfloat16)            # weights to bf16 (MXU operands)

    def full2d(shape):
        return pl.BlockSpec(shape, lambda b, qi: (0, 0))

    out = pl.pallas_call(
        functools.partial(_decoder_block_kernel, n_heads),
        out_shape=jax.ShapeDtypeStruct((B, S, D), jnp.float32),
        grid=(B, S // TQ),
        in_specs=[
            pl.BlockSpec((pl.Squeezed(), TQ, D), lambda b, qi: (b, qi, 0)),  # x (q rows)
            pl.BlockSpec((pl.Squeezed(), S, D), lambda b, qi: (b, 0, 0)),    # x (k/v)
            full2d((D, D)), full2d((D, D)), full2d((D, D)),   # wq, wk, wv
            full2d((1, D)), full2d((1, D)), full2d((1, D)),   # bq, bk, bv
            full2d((D, D)), full2d((1, D)),                   # wo, bo
            full2d((1, D)), full2d((1, D)),                   # ln1 gamma, beta
            full2d((D, F)), full2d((1, F)),                   # w1, b1
            full2d((F, D)), full2d((1, D)),                   # w2, b2
            full2d((1, D)), full2d((1, D)),                   # ln2 gamma, beta
        ],
        out_specs=pl.BlockSpec((pl.Squeezed(), TQ, D), lambda b, qi: (b, qi, 0)),
        compiler_params=pltpu.CompilerParams(
            dimension_semantics=("parallel", "parallel"),
            vmem_limit_bytes=64 * 1024 * 1024),
    )(x, x,
      bf(params["wq"]), bf(params["wk"]), bf(params["wv"]),
      params["bq"], params["bk"], params["bv"],
      bf(params["wo"]), params["bo"],
      params["g1"], params["be1"],
      bf(params["w1"]), params["b1"], bf(params["w2"]), params["b2"],
      params["g2"], params["be2"])

    return jnp.transpose(out, (1, 0, 2))             # back to (S, B, D)


def _reference(x_sbd, params, n_heads):
    """Pure-JAX f32 reference of the same math (for a sanity check)."""
    x = jnp.transpose(x_sbd, (1, 0, 2))
    B, S, D = x.shape
    hd = D // n_heads
    q = x @ params["wq"] + params["bq"]
    k = x @ params["wk"] + params["bk"]
    v = x @ params["wv"] + params["bv"]
    rs = lambda t: t.reshape(B, S, n_heads, hd).transpose(0, 2, 1, 3)
    qh, kh, vh = rs(q), rs(k), rs(v)
    s = jnp.einsum("bhqd,bhkd->bhqk", qh, kh) / math.sqrt(hd)
    p = jax.nn.softmax(s, axis=-1)
    a = jnp.einsum("bhqk,bhkd->bhqd", p, vh).transpose(0, 2, 1, 3).reshape(B, S, D)
    a = a @ params["wo"] + params["bo"]
    y = _layernorm(x + a, params["g1"], params["be1"])
    ff = jnp.maximum(y @ params["w1"] + params["b1"], 0.0) @ params["w2"] + params["b2"]
    z = _layernorm(y + ff, params["g2"], params["be2"])
    return jnp.transpose(z, (1, 0, 2))


def init_params(key, d_model, d_ff):
    ks = jax.random.split(key, 8)
    n = lambda k, shape: (0.02 * jax.random.normal(k, shape)).astype(jnp.float32)
    return {
        "wq": n(ks[0], (d_model, d_model)), "bq": n(ks[1], (1, d_model)),
        "wk": n(ks[2], (d_model, d_model)), "bk": n(ks[3], (1, d_model)),
        "wv": n(ks[4], (d_model, d_model)), "bv": n(ks[5], (1, d_model)),
        "wo": n(ks[6], (d_model, d_model)), "bo": jnp.zeros((1, d_model), jnp.float32),
        "g1": jnp.ones((1, d_model), jnp.float32), "be1": jnp.zeros((1, d_model), jnp.float32),
        "w1": n(ks[7], (d_model, d_ff)), "b1": jnp.zeros((1, d_ff), jnp.float32),
        "w2": n(jax.random.fold_in(key, 99), (d_ff, d_model)),
        "b2": jnp.zeros((1, d_model), jnp.float32),
        "g2": jnp.ones((1, d_model), jnp.float32), "be2": jnp.zeros((1, d_model), jnp.float32),
    }


if __name__ == "__main__":
    d_model, n_heads, d_ff = 32, 4, 64
    seq, batch = 8, 2

    key = jax.random.PRNGKey(0)
    kx, kp = jax.random.split(key)
    x = jax.random.normal(kx, (seq, batch, d_model), dtype=jnp.float32)
    params = init_params(kp, d_model, d_ff)

    out = decoder_block(x, params, n_heads)
    out = jax.block_until_ready(out)

    ref = _reference(x, params, n_heads)
    assert out.shape == (seq, batch, d_model)
    # bf16 MXU operands + approx reciprocal => loosened tolerance vs f32 reference
    assert jnp.allclose(out, ref, atol=2e-2, rtol=2e-2), "mismatch vs pure-JAX reference"

    print("KERNEL_OK")
</pallas_src>

<mosaic_0001>
module attributes {stable_mosaic.version = 11 : i64} {
  func.func @_decoder_block_kernel(%arg0: i32, %arg1: i32, %arg2: memref<1x8x32xf32, #tpu.memory_space<vmem>>, %arg3: memref<1x8x32xf32, #tpu.memory_space<vmem>>, %arg4: memref<32x32xbf16, #tpu.memory_space<vmem>>, %arg5: memref<32x32xbf16, #tpu.memory_space<vmem>>, %arg6: memref<32x32xbf16, #tpu.memory_space<vmem>>, %arg7: memref<1x32xf32, #tpu.memory_space<vmem>>, %arg8: memref<1x32xf32, #tpu.memory_space<vmem>>, %arg9: memref<1x32xf32, #tpu.memory_space<vmem>>, %arg10: memref<32x32xbf16, #tpu.memory_space<vmem>>, %arg11: memref<1x32xf32, #tpu.memory_space<vmem>>, %arg12: memref<1x32xf32, #tpu.memory_space<vmem>>, %arg13: memref<1x32xf32, #tpu.memory_space<vmem>>, %arg14: memref<32x64xbf16, #tpu.memory_space<vmem>>, %arg15: memref<1x64xf32, #tpu.memory_space<vmem>>, %arg16: memref<64x32xbf16, #tpu.memory_space<vmem>>, %arg17: memref<1x32xf32, #tpu.memory_space<vmem>>, %arg18: memref<1x32xf32, #tpu.memory_space<vmem>>, %arg19: memref<1x32xf32, #tpu.memory_space<vmem>>, %arg20: memref<1x8x32xf32, #tpu.memory_space<vmem>>) attributes {dimension_semantics = [#tpu.dimension_semantics<parallel>, #tpu.dimension_semantics<parallel>], iteration_bounds = array<i64: 2, 1>, scalar_prefetch = 0 : i64, scratch_operands = 0 : i64, tpu.core_type = #tpu.core_type<tc>, window_params = [{transform_indices = @transform_0, window_bounds = array<i64: 1, 8, 32>}, {transform_indices = @transform_1, window_bounds = array<i64: 1, 8, 32>}, {pipeline_mode = #tpu.pipeline_mode<synchronous>, transform_indices = @transform_2, window_bounds = array<i64: 32, 32>}, {pipeline_mode = #tpu.pipeline_mode<synchronous>, transform_indices = @transform_3, window_bounds = array<i64: 32, 32>}, {pipeline_mode = #tpu.pipeline_mode<synchronous>, transform_indices = @transform_4, window_bounds = array<i64: 32, 32>}, {pipeline_mode = #tpu.pipeline_mode<synchronous>, transform_indices = @transform_5, window_bounds = array<i64: 1, 32>}, {pipeline_mode = #tpu.pipeline_mode<synchronous>, transform_indices = @transform_6, window_bounds = array<i64: 1, 32>}, {pipeline_mode = #tpu.pipeline_mode<synchronous>, transform_indices = @transform_7, window_bounds = array<i64: 1, 32>}, {pipeline_mode = #tpu.pipeline_mode<synchronous>, transform_indices = @transform_8, window_bounds = array<i64: 32, 32>}, {pipeline_mode = #tpu.pipeline_mode<synchronous>, transform_indices = @transform_9, window_bounds = array<i64: 1, 32>}, {pipeline_mode = #tpu.pipeline_mode<synchronous>, transform_indices = @transform_10, window_bounds = array<i64: 1, 32>}, {pipeline_mode = #tpu.pipeline_mode<synchronous>, transform_indices = @transform_11, window_bounds = array<i64: 1, 32>}, {pipeline_mode = #tpu.pipeline_mode<synchronous>, transform_indices = @transform_12, window_bounds = array<i64: 32, 64>}, {pipeline_mode = #tpu.pipeline_mode<synchronous>, transform_indices = @transform_13, window_bounds = array<i64: 1, 64>}, {pipeline_mode = #tpu.pipeline_mode<synchronous>, transform_indices = @transform_14, window_bounds = array<i64: 64, 32>}, {pipeline_mode = #tpu.pipeline_mode<synchronous>, transform_indices = @transform_15, window_bounds = array<i64: 1, 32>}, {pipeline_mode = #tpu.pipeline_mode<synchronous>, transform_indices = @transform_16, window_bounds = array<i64: 1, 32>}, {pipeline_mode = #tpu.pipeline_mode<synchronous>, transform_indices = @transform_17, window_bounds = array<i64: 1, 32>}, {transform_indices = @transform_18, window_bounds = array<i64: 1, 8, 32>}]} {
    %c0 = arith.constant 0 : index
    %c0_0 = arith.constant 0 : index
    %c0_1 = arith.constant 0 : index
    %0 = vector.load %arg2[%c0, %c0_0, %c0_1] : memref<1x8x32xf32, #tpu.memory_space<vmem>>, vector<1x8x32xf32>
    %1 = vector.shape_cast %0 : vector<1x8x32xf32> to vector<8x32xf32>
    %c0_2 = arith.constant 0 : index
    %c0_3 = arith.constant 0 : index
    %c0_4 = arith.constant 0 : index
    %2 = vector.load %arg3[%c0_2, %c0_3, %c0_4] : memref<1x8x32xf32, #tpu.memory_space<vmem>>, vector<1x8x32xf32>
    %3 = vector.shape_cast %2 : vector<1x8x32xf32> to vector<8x32xf32>
    %4 = arith.truncf %1 : vector<8x32xf32> to vector<8x32xbf16>
    %5 = arith.truncf %3 : vector<8x32xf32> to vector<8x32xbf16>
    %c0_5 = arith.constant 0 : index
    %c0_6 = arith.constant 0 : index
    %6 = vector.load %arg4[%c0_5, %c0_6] : memref<32x32xbf16, #tpu.memory_space<vmem>>, vector<32x32xbf16>
    %cst = arith.constant dense<0.000000e+00> : vector<8x32xf32>
    %7 = tpu.matmul %4, %6, %cst {dimension_numbers = #tpu.dot_dimension_numbers<[1], [0], [0], [1], [0, 0, 1, 1], [], []>} : vector<8x32xbf16>, vector<32x32xbf16>, vector<8x32xf32> -> vector<8x32xf32>
    %c0_7 = arith.constant 0 : index
    %c0_8 = arith.constant 0 : index
    %8 = vector.load %arg7[%c0_7, %c0_8] : memref<1x32xf32, #tpu.memory_space<vmem>>, vector<1x32xf32>
    %9 = vector.broadcast %8 : vector<1x32xf32> to vector<8x32xf32>
    %10 = arith.addf %7, %9 : vector<8x32xf32>
    %c0_9 = arith.constant 0 : index
    %c0_10 = arith.constant 0 : index
    %11 = vector.load %arg5[%c0_9, %c0_10] : memref<32x32xbf16, #tpu.memory_space<vmem>>, vector<32x32xbf16>
    %cst_11 = arith.constant dense<0.000000e+00> : vector<8x32xf32>
    %12 = tpu.matmul %5, %11, %cst_11 {dimension_numbers = #tpu.dot_dimension_numbers<[1], [0], [0], [1], [0, 0, 1, 1], [], []>} : vector<8x32xbf16>, vector<32x32xbf16>, vector<8x32xf32> -> vector<8x32xf32>
    %c0_12 = arith.constant 0 : index
    %c0_13 = arith.constant 0 : index
    %13 = vector.load %arg8[%c0_12, %c0_13] : memref<1x32xf32, #tpu.memory_space<vmem>>, vector<1x32xf32>
    %14 = vector.broadcast %13 : vector<1x32xf32> to vector<8x32xf32>
    %15 = arith.addf %12, %14 : vector<8x32xf32>
    %c0_14 = arith.constant 0 : index
    %c0_15 = arith.constant 0 : index
    %16 = vector.load %arg6[%c0_14, %c0_15] : memref<32x32xbf16, #tpu.memory_space<vmem>>, vector<32x32xbf16>
    %cst_16 = arith.constant dense<0.000000e+00> : vector<8x32xf32>
    %17 = tpu.matmul %5, %16, %cst_16 {dimension_numbers = #tpu.dot_dimension_numbers<[1], [0], [0], [1], [0, 0, 1, 1], [], []>} : vector<8x32xbf16>, vector<32x32xbf16>, vector<8x32xf32> -> vector<8x32xf32>
    %c0_17 = arith.constant 0 : index
    %c0_18 = arith.constant 0 : index
    %18 = vector.load %arg9[%c0_17, %c0_18] : memref<1x32xf32, #tpu.memory_space<vmem>>, vector<1x32xf32>
    %19 = vector.broadcast %18 : vector<1x32xf32> to vector<8x32xf32>
    %20 = arith.addf %17, %19 : vector<8x32xf32>
    %cst_19 = arith.constant 0.353553385 : f32
    %21 = vector.broadcast %cst_19 : f32 to vector<8x32xf32>
    %22 = arith.mulf %10, %21 : vector<8x32xf32>
    %23 = vector.shape_cast %22 : vector<8x32xf32> to vector<8x4x8xf32>
    %24 = arith.truncf %23 : vector<8x4x8xf32> to vector<8x4x8xbf16>
    %25 = tpu.transpose %24, [1, 0, 2] : vector<8x4x8xbf16> -> vector<4x8x8xbf16>
    %26 = vector.shape_cast %15 : vector<8x32xf32> to vector<8x4x8xf32>
    %27 = arith.truncf %26 : vector<8x4x8xf32> to vector<8x4x8xbf16>
    %28 = tpu.transpose %27, [1, 0, 2] : vector<8x4x8xbf16> -> vector<4x8x8xbf16>
    %29 = vector.shape_cast %20 : vector<8x32xf32> to vector<8x4x8xf32>
    %30 = arith.truncf %29 : vector<8x4x8xf32> to vector<8x4x8xbf16>
    %31 = tpu.transpose %30, [1, 0, 2] : vector<8x4x8xbf16> -> vector<4x8x8xbf16>
    "tpu.trace_start"() <{level = 10 : i32, message = "hqd,hkd->hqk"}> : () -> ()
    %cst_20 = arith.constant dense<0.000000e+00> : vector<4x8x8xf32>
    %32 = tpu.matmul %25, %28, %cst_20 {dimension_numbers = #tpu.dot_dimension_numbers<[2], [2], [1], [1], [0, 0, 0, 1, 1, 1], [0], [0]>} : vector<4x8x8xbf16>, vector<4x8x8xbf16>, vector<4x8x8xf32> -> vector<4x8x8xf32>
    "tpu.trace_stop"() : () -> ()
    %cst_21 = arith.constant dense<0xFF800000> : vector<4x8xf32>
    %33 = vector.multi_reduction <maximumf>, %32, %cst_21 [2] : vector<4x8x8xf32> to vector<4x8xf32>
    %34 = vector.shape_cast %33 : vector<4x8xf32> to vector<4x8x1xf32>
    %35 = vector.broadcast %34 : vector<4x8x1xf32> to vector<4x8x8xf32>
    %36 = arith.subf %32, %35 : vector<4x8x8xf32>
    %37 = math.exp %36 : vector<4x8x8xf32>
    %cst_22 = arith.constant dense<0.000000e+00> : vector<4x8xf32>
    %38 = vector.multi_reduction <add>, %37, %cst_22 [2] : vector<4x8x8xf32> to vector<4x8xf32>
    %39 = vector.shape_cast %38 : vector<4x8xf32> to vector<4x8x1xf32>
    %40 = tpu.reciprocal %39 {approx = true} : vector<4x8x1xf32> -> vector<4x8x1xf32>
    %41 = vector.broadcast %40 : vector<4x8x1xf32> to vector<4x8x8xf32>
    %42 = arith.mulf %37, %41 : vector<4x8x8xf32>
    %43 = arith.truncf %42 : vector<4x8x8xf32> to vector<4x8x8xbf16>
    "tpu.trace_start"() <{level = 10 : i32, message = "hqk,hkd->hqd"}> : () -> ()
    %cst_23 = arith.constant dense<0.000000e+00> : vector<4x8x8xf32>
    %44 = tpu.matmul %43, %31, %cst_23 {dimension_numbers = #tpu.dot_dimension_numbers<[2], [1], [1], [2], [0, 0, 0, 1, 1, 2], [0], [0]>} : vector<4x8x8xbf16>, vector<4x8x8xbf16>, vector<4x8x8xf32> -> vector<4x8x8xf32>
    "tpu.trace_stop"() : () -> ()
    %45 = tpu.transpose %44, [1, 0, 2] : vector<4x8x8xf32> -> vector<8x4x8xf32>
    %46 = vector.shape_cast %45 : vector<8x4x8xf32> to vector<8x32xf32>
    %47 = arith.truncf %46 : vector<8x32xf32> to vector<8x32xbf16>
    %c0_24 = arith.constant 0 : index
    %c0_25 = arith.constant 0 : index
    %48 = vector.load %arg10[%c0_24, %c0_25] : memref<32x32xbf16, #tpu.memory_space<vmem>>, vector<32x32xbf16>
    %cst_26 = arith.constant dense<0.000000e+00> : vector<8x32xf32>
    %49 = tpu.matmul %47, %48, %cst_26 {dimension_numbers = #tpu.dot_dimension_numbers<[1], [0], [0], [1], [0, 0, 1, 1], [], []>} : vector<8x32xbf16>, vector<32x32xbf16>, vector<8x32xf32> -> vector<8x32xf32>
    %c0_27 = arith.constant 0 : index
    %c0_28 = arith.constant 0 : index
    %50 = vector.load %arg11[%c0_27, %c0_28] : memref<1x32xf32, #tpu.memory_space<vmem>>, vector<1x32xf32>
    %51 = vector.broadcast %50 : vector<1x32xf32> to vector<8x32xf32>
    %52 = arith.addf %49, %51 : vector<8x32xf32>
    %53 = arith.addf %1, %52 : vector<8x32xf32>
    %c0_29 = arith.constant 0 : index
    %c0_30 = arith.constant 0 : index
    %54 = vector.load %arg12[%c0_29, %c0_30] : memref<1x32xf32, #tpu.memory_space<vmem>>, vector<1x32xf32>
    %c0_31 = arith.constant 0 : index
    %c0_32 = arith.constant 0 : index
    %55 = vector.load %arg13[%c0_31, %c0_32] : memref<1x32xf32, #tpu.memory_space<vmem>>, vector<1x32xf32>
    %cst_33 = arith.constant dense<0.000000e+00> : vector<8xf32>
    %56 = vector.multi_reduction <add>, %53, %cst_33 [1] : vector<8x32xf32> to vector<8xf32>
    %57 = vector.shape_cast %56 : vector<8xf32> to vector<8x1xf32>
    %cst_34 = arith.constant 3.200000e+01 : f32
    %58 = vector.broadcast %cst_34 : f32 to vector<8x1xf32>
    %59 = arith.divf %57, %58 : vector<8x1xf32>
    %60 = arith.mulf %53, %53 : vector<8x32xf32>
    %cst_35 = arith.constant dense<0.000000e+00> : vector<8xf32>
    %61 = vector.multi_reduction <add>, %60, %cst_35 [1] : vector<8x32xf32> to vector<8xf32>
    %62 = vector.shape_cast %61 : vector<8xf32> to vector<8x1xf32>
    %cst_36 = arith.constant 3.200000e+01 : f32
    %63 = vector.broadcast %cst_36 : f32 to vector<8x1xf32>
    %64 = arith.divf %62, %63 : vector<8x1xf32>
    %65 = arith.mulf %59, %59 : vector<8x1xf32>
    %66 = arith.subf %64, %65 : vector<8x1xf32>
    %67 = vector.broadcast %59 : vector<8x1xf32> to vector<8x32xf32>
    %68 = arith.subf %53, %67 : vector<8x32xf32>
    %cst_37 = arith.constant 9.99999974E-6 : f32
    %69 = vector.broadcast %cst_37 : f32 to vector<8x1xf32>
    %70 = arith.addf %66, %69 : vector<8x1xf32>
    %71 = math.rsqrt %70 : vector<8x1xf32>
    %72 = vector.broadcast %71 : vector<8x1xf32> to vector<8x32xf32>
    %73 = arith.mulf %68, %72 : vector<8x32xf32>
    %74 = vector.broadcast %54 : vector<1x32xf32> to vector<8x32xf32>
    %75 = arith.mulf %73, %74 : vector<8x32xf32>
    %76 = vector.broadcast %55 : vector<1x32xf32> to vector<8x32xf32>
    %77 = arith.addf %75, %76 : vector<8x32xf32>
    %78 = arith.truncf %77 : vector<8x32xf32> to vector<8x32xbf16>
    %c0_38 = arith.constant 0 : index
    %c0_39 = arith.constant 0 : index
    %79 = vector.load %arg14[%c0_38, %c0_39] : memref<32x64xbf16, #tpu.memory_space<vmem>>, vector<32x64xbf16>
    %cst_40 = arith.constant dense<0.000000e+00> : vector<8x64xf32>
    %80 = tpu.matmul %78, %79, %cst_40 {dimension_numbers = #tpu.dot_dimension_numbers<[1], [0], [0], [1], [0, 0, 1, 1], [], []>} : vector<8x32xbf16>, vector<32x64xbf16>, vector<8x64xf32> -> vector<8x64xf32>
    %c0_41 = arith.constant 0 : index
    %c0_42 = arith.constant 0 : index
    %81 = vector.load %arg15[%c0_41, %c0_42] : memref<1x64xf32, #tpu.memory_space<vmem>>, vector<1x64xf32>
    %82 = vector.broadcast %81 : vector<1x64xf32> to vector<8x64xf32>
    %83 = arith.addf %80, %82 : vector<8x64xf32>
    %cst_43 = arith.constant 0.000000e+00 : f32
    %84 = vector.broadcast %cst_43 : f32 to vector<8x64xf32>
    %85 = arith.maximumf %83, %84 : vector<8x64xf32>
    %86 = arith.truncf %85 : vector<8x64xf32> to vector<8x64xbf16>
    %c0_44 = arith.constant 0 : index
    %c0_45 = arith.constant 0 : index
    %87 = vector.load %arg16[%c0_44, %c0_45] : memref<64x32xbf16, #tpu.memory_space<vmem>>, vector<64x32xbf16>
    %cst_46 = arith.constant dense<0.000000e+00> : vector<8x32xf32>
    %88 = tpu.matmul %86, %87, %cst_46 {dimension_numbers = #tpu.dot_dimension_numbers<[1], [0], [0], [1], [0, 0, 1, 1], [], []>} : vector<8x64xbf16>, vector<64x32xbf16>, vector<8x32xf32> -> vector<8x32xf32>
    %c0_47 = arith.constant 0 : index
    %c0_48 = arith.constant 0 : index
    %89 = vector.load %arg17[%c0_47, %c0_48] : memref<1x32xf32, #tpu.memory_space<vmem>>, vector<1x32xf32>
    %90 = vector.broadcast %89 : vector<1x32xf32> to vector<8x32xf32>
    %91 = arith.addf %88, %90 : vector<8x32xf32>
    %92 = arith.addf %77, %91 : vector<8x32xf32>
    %c0_49 = arith.constant 0 : index
    %c0_50 = arith.constant 0 : index
    %93 = vector.load %arg18[%c0_49, %c0_50] : memref<1x32xf32, #tpu.memory_space<vmem>>, vector<1x32xf32>
    %c0_51 = arith.constant 0 : index
    %c0_52 = arith.constant 0 : index
    %94 = vector.load %arg19[%c0_51, %c0_52] : memref<1x32xf32, #tpu.memory_space<vmem>>, vector<1x32xf32>
    %cst_53 = arith.constant dense<0.000000e+00> : vector<8xf32>
    %95 = vector.multi_reduction <add>, %92, %cst_53 [1] : vector<8x32xf32> to vector<8xf32>
    %96 = vector.shape_cast %95 : vector<8xf32> to vector<8x1xf32>
    %cst_54 = arith.constant 3.200000e+01 : f32
    %97 = vector.broadcast %cst_54 : f32 to vector<8x1xf32>
    %98 = arith.divf %96, %97 : vector<8x1xf32>
    %99 = arith.mulf %92, %92 : vector<8x32xf32>
    %cst_55 = arith.constant dense<0.000000e+00> : vector<8xf32>
    %100 = vector.multi_reduction <add>, %99, %cst_55 [1] : vector<8x32xf32> to vector<8xf32>
    %101 = vector.shape_cast %100 : vector<8xf32> to vector<8x1xf32>
    %cst_56 = arith.constant 3.200000e+01 : f32
    %102 = vector.broadcast %cst_56 : f32 to vector<8x1xf32>
    %103 = arith.divf %101, %102 : vector<8x1xf32>
    %104 = arith.mulf %98, %98 : vector<8x1xf32>
    %105 = arith.subf %103, %104 : vector<8x1xf32>
    %106 = vector.broadcast %98 : vector<8x1xf32> to vector<8x32xf32>
    %107 = arith.subf %92, %106 : vector<8x32xf32>
    %cst_57 = arith.constant 9.99999974E-6 : f32
    %108 = vector.broadcast %cst_57 : f32 to vector<8x1xf32>
    %109 = arith.addf %105, %108 : vector<8x1xf32>
    %110 = math.rsqrt %109 : vector<8x1xf32>
    %111 = vector.broadcast %110 : vector<8x1xf32> to vector<8x32xf32>
    %112 = arith.mulf %107, %111 : vector<8x32xf32>
    %113 = vector.broadcast %93 : vector<1x32xf32> to vector<8x32xf32>
    %114 = arith.mulf %112, %113 : vector<8x32xf32>
    %115 = vector.broadcast %94 : vector<1x32xf32> to vector<8x32xf32>
    %116 = arith.addf %114, %115 : vector<8x32xf32>
    %c0_58 = arith.constant 0 : index
    %c0_59 = arith.constant 0 : index
    %c0_60 = arith.constant 0 : index
    %117 = vector.load %arg20[%c0_58, %c0_59, %c0_60] : memref<1x8x32xf32, #tpu.memory_space<vmem>>, vector<1x8x32xf32>
    %118 = vector.shape_cast %117 : vector<1x8x32xf32> to vector<8x32xf32>
    %119 = vector.shape_cast %116 : vector<8x32xf32> to vector<1x8x32xf32>
    tpu.vector_store %arg20[%c0_58, %c0_59, %c0_60], %119 {strides = array<i32>} : memref<1x8x32xf32, #tpu.memory_space<vmem>>, vector<1x8x32xf32>,
    return
  }
  func.func @transform_0(%arg0: i32, %arg1: i32) -> (i32, i32, i32) {
    %c0_i32 = arith.constant 0 : i32
    %c0_i32_0 = arith.constant 0 : i32
    return %arg0, %arg1, %c0_i32 : i32, i32, i32
  }
  func.func @transform_1(%arg0: i32, %arg1: i32) -> (i32, i32, i32) {
    %c0_i32 = arith.constant 0 : i32
    %c0_i32_0 = arith.constant 0 : i32
    %c0_i32_1 = arith.constant 0 : i32
    return %arg0, %c0_i32, %c0_i32_0 : i32, i32, i32
  }
  func.func @transform_2(%arg0: i32, %arg1: i32) -> (i32, i32) {
    %c0_i32 = arith.constant 0 : i32
    %c0_i32_0 = arith.constant 0 : i32
    %c0_i32_1 = arith.constant 0 : i32
    return %c0_i32, %c0_i32_0 : i32, i32
  }
  func.func @transform_3(%arg0: i32, %arg1: i32) -> (i32, i32) {
    %c0_i32 = arith.constant 0 : i32
    %c0_i32_0 = arith.constant 0 : i32
    %c0_i32_1 = arith.constant 0 : i32
    return %c0_i32, %c0_i32_0 : i32, i32
  }
  func.func @transform_4(%arg0: i32, %arg1: i32) -> (i32, i32) {
    %c0_i32 = arith.constant 0 : i32
    %c0_i32_0 = arith.constant 0 : i32
    %c0_i32_1 = arith.constant 0 : i32
    return %c0_i32, %c0_i32_0 : i32, i32
  }
  func.func @transform_5(%arg0: i32, %arg1: i32) -> (i32, i32) {
    %c0_i32 = arith.constant 0 : i32
    %c0_i32_0 = arith.constant 0 : i32
    %c0_i32_1 = arith.constant 0 : i32
    return %c0_i32, %c0_i32_0 : i32, i32
  }
  func.func @transform_6(%arg0: i32, %arg1: i32) -> (i32, i32) {
    %c0_i32 = arith.constant 0 : i32
    %c0_i32_0 = arith.constant 0 : i32
    %c0_i32_1 = arith.constant 0 : i32
    return %c0_i32, %c0_i32_0 : i32, i32
  }
  func.func @transform_7(%arg0: i32, %arg1: i32) -> (i32, i32) {
    %c0_i32 = arith.constant 0 : i32
    %c0_i32_0 = arith.constant 0 : i32
    %c0_i32_1 = arith.constant 0 : i32
    return %c0_i32, %c0_i32_0 : i32, i32
  }
  func.func @transform_8(%arg0: i32, %arg1: i32) -> (i32, i32) {
    %c0_i32 = arith.constant 0 : i32
    %c0_i32_0 = arith.constant 0 : i32
    %c0_i32_1 = arith.constant 0 : i32
    return %c0_i32, %c0_i32_0 : i32, i32
  }
  func.func @transform_9(%arg0: i32, %arg1: i32) -> (i32, i32) {
    %c0_i32 = arith.constant 0 : i32
    %c0_i32_0 = arith.constant 0 : i32
    %c0_i32_1 = arith.constant 0 : i32
    return %c0_i32, %c0_i32_0 : i32, i32
  }
  func.func @transform_10(%arg0: i32, %arg1: i32) -> (i32, i32) {
    %c0_i32 = arith.constant 0 : i32
    %c0_i32_0 = arith.constant 0 : i32
    %c0_i32_1 = arith.constant 0 : i32
    return %c0_i32, %c0_i32_0 : i32, i32
  }
  func.func @transform_11(%arg0: i32, %arg1: i32) -> (i32, i32) {
    %c0_i32 = arith.constant 0 : i32
    %c0_i32_0 = arith.constant 0 : i32
    %c0_i32_1 = arith.constant 0 : i32
    return %c0_i32, %c0_i32_0 : i32, i32
  }
  func.func @transform_12(%arg0: i32, %arg1: i32) -> (i32, i32) {
    %c0_i32 = arith.constant 0 : i32
    %c0_i32_0 = arith.constant 0 : i32
    %c0_i32_1 = arith.constant 0 : i32
    return %c0_i32, %c0_i32_0 : i32, i32
  }
  func.func @transform_13(%arg0: i32, %arg1: i32) -> (i32, i32) {
    %c0_i32 = arith.constant 0 : i32
    %c0_i32_0 = arith.constant 0 : i32
    %c0_i32_1 = arith.constant 0 : i32
    return %c0_i32, %c0_i32_0 : i32, i32
  }
  func.func @transform_14(%arg0: i32, %arg1: i32) -> (i32, i32) {
    %c0_i32 = arith.constant 0 : i32
    %c0_i32_0 = arith.constant 0 : i32
    %c0_i32_1 = arith.constant 0 : i32
    return %c0_i32, %c0_i32_0 : i32, i32
  }
  func.func @transform_15(%arg0: i32, %arg1: i32) -> (i32, i32) {
    %c0_i32 = arith.constant 0 : i32
    %c0_i32_0 = arith.constant 0 : i32
    %c0_i32_1 = arith.constant 0 : i32
    return %c0_i32, %c0_i32_0 : i32, i32
  }
  func.func @transform_16(%arg0: i32, %arg1: i32) -> (i32, i32) {
    %c0_i32 = arith.constant 0 : i32
    %c0_i32_0 = arith.constant 0 : i32
    %c0_i32_1 = arith.constant 0 : i32
    return %c0_i32, %c0_i32_0 : i32, i32
  }
  func.func @transform_17(%arg0: i32, %arg1: i32) -> (i32, i32) {
    %c0_i32 = arith.constant 0 : i32
    %c0_i32_0 = arith.constant 0 : i32
    %c0_i32_1 = arith.constant 0 : i32
    return %c0_i32, %c0_i32_0 : i32, i32
  }
  func.func @transform_18(%arg0: i32, %arg1: i32) -> (i32, i32, i32) {
    %c0_i32 = arith.constant 0 : i32
    %c0_i32_0 = arith.constant 0 : i32
    return %arg0, %arg1, %c0_i32 : i32, i32, i32
  }
}

</mosaic_0001>

<llo_original>
// kernel: tpu_custom_call.1
$region0: #{tpu_custom_call.1}
  #allocation0 [shape = 'u32[]', space=smem, size = 0x4, offset = 0x4, fixed_abs, tag = 'smem constant byte address 0x4 - core index']
  #allocation1 [shape = 'u32[144,128]{1,0:T(1,128)}', space=vmem, size = 0x12000, scoped, tag = 'internal scratch']
  %s0 = inlined_call_operand.vmem [shape: f32[2,8,32], index: 0, kind: input, shape index: {}]
  %s1 = inlined_call_operand.vmem [shape: f32[2,8,32], index: 1, kind: input, shape index: {}]
  %s2 = inlined_call_operand.vmem [shape: bf16[32,32], index: 2, kind: input, shape index: {}]
  %s3 = inlined_call_operand.hbm [shape: bf16[32,32], index: 3, kind: input, shape index: {}]
  %s4 = inlined_call_operand.hbm [shape: bf16[32,32], index: 4, kind: input, shape index: {}]
  %s5 = inlined_call_operand.hbm [shape: f32[1,32], index: 5, kind: input, shape index: {}]
  %s6 = inlined_call_operand.hbm [shape: f32[1,32], index: 6, kind: input, shape index: {}]
  %s7 = inlined_call_operand.hbm [shape: f32[1,32], index: 7, kind: input, shape index: {}]
  %s8 = inlined_call_operand.hbm [shape: bf16[32,32], index: 8, kind: input, shape index: {}]
  %s9 = inlined_call_operand.hbm [shape: f32[1,32], index: 9, kind: input, shape index: {}]
  %s10 = inlined_call_operand.vmem [shape: f32[1,32], index: 10, kind: input, shape index: {}]
  %s11 = inlined_call_operand.vmem [shape: f32[1,32], index: 11, kind: input, shape index: {}]
  %s12 = inlined_call_operand.vmem [shape: bf16[32,64], index: 12, kind: input, shape index: {}]
  %s13 = inlined_call_operand.vmem [shape: f32[1,64], index: 13, kind: input, shape index: {}]
  %s14 = inlined_call_operand.vmem [shape: bf16[64,32], index: 14, kind: input, shape index: {}]
  %s15 = inlined_call_operand.vmem [shape: f32[1,32], index: 15, kind: input, shape index: {}]
  %s16 = inlined_call_operand.vmem [shape: f32[1,32], index: 16, kind: input, shape index: {}]
  %s17 = inlined_call_operand.vmem [shape: f32[1,32], index: 17, kind: input, shape index: {}]
  %s18 = inlined_call_operand.hbm [shape: f32[2,8,32], index: 18, kind: output, shape index: {}]
  %s19 = sld [smem:[#allocation0]]
  $region133: #{tpu_custom_call.1} parent=0
    _
  %s21 = ssub.s32 1, %s19
  %s22 = scalar_select 0, %s21, %s19
  $region1: #{tpu_custom_call.1} parent=0
    #allocation2 [shape = 'u8[8192]{0}', space=vmem, size = 0x2000, scoped, tag = 'input window, operand 3, single buffered']
    #allocation3 [shape = 's32[2]{0}', space=sflag, size = 0x8, scoped, tag = 'scoped memory for tpu_custom_call.1']
    #allocation4 [shape = 's32[2]{0}', space=sflag, size = 0x8, scoped, tag = 'scoped memory for tpu_custom_call.1']
    #allocation5 [shape = 'u8[8192]{0}', space=vmem, size = 0x2000, scoped, tag = 'input window, operand 4, single buffered']
    #allocation6 [shape = 's32[1]{0}', space=sflag, size = 0x4, scoped, tag = 'scoped memory for tpu_custom_call.1']
    #allocation7 [shape = 'u8[512]{0}', space=vmem, size = 0x400, scoped, tag = 'input window, operand 5, single buffered']
    #allocation8 [shape = 'u8[512]{0}', space=vmem, size = 0x400, scoped, tag = 'input window, operand 6, single buffered']
    #allocation9 [shape = 's32[1]{0}', space=sflag, size = 0x4, scoped, tag = 'scoped memory for tpu_custom_call.1']
    #allocation10 [shape = 'u8[512]{0}', space=vmem, size = 0x400, scoped, tag = 'input window, operand 7, single buffered']
    #allocation11 [shape = 'u8[8192]{0}', space=vmem, size = 0x2000, scoped, tag = 'input window, operand 8, single buffered']
    #allocation12 [shape = 's32[1]{0}', space=sflag, size = 0x4, scoped, tag = 'scoped memory for tpu_custom_call.1']
    #allocation13 [shape = 'u8[512]{0}', space=vmem, size = 0x400, scoped, tag = 'input window, operand 9, single buffered']
    #allocation14 [shape = 'u8[8192]{0}', space=vmem, size = 0x2000, scoped, tag = 'output window, operand 0']
    %23 = vsyncpa [#allocation3], 0
    %24 = vsyncpa [#allocation6], 0
    %25 = vsyncpa [#allocation9], 0
    %26 = vsyncpa [#allocation12], 0
    %27 = vsyncpa [#allocation4], 0
    %s28 = scalar_lea.sflag [#allocation4], 1
    %29 = vsyncpa %s28, 0
    loop: start=0, step=1, limit=4
    $region2: #{tpu_custom_call.1} parent=1 // loop_pre_header
      _
    $region3: #{tpu_custom_call.1} parent=1 // loop_header
      %s31 = sphi 0, %s35
      %p32 = scmp.ge.s32.totalorder %s31, 4
      %s38 = sphi 0, %s50
      %s39 = sphi 0, %s46
      %s40 = sphi 0, %s38
      %s41 = sphi 0, %s39
      %s42 = sphi 0, %s40
      %s43 = sphi 0, %s41
      %s55 = sphi 0, %s57
      %s58 = sphi 0, %s55
      %s59 = sphi 0, %s58
      %s75 = sphi 0, %s59
      %s81 = sphi 0, %s83
      %s84 = sphi 0, %s81
      %s85 = sphi 0, %s84
      %s101 = sphi 0, %s85
      %s105 = sphi 0, %s105
      %s107 = sphi 0, %s105
      %s108 = sphi 0, %s107
      %s122 = sphi 0, %s108
      %s126 = sphi 0, %s126
      %s128 = sphi 0, %s126
      %s129 = sphi 0, %s128
      %s143 = sphi 0, %s129
      %s147 = sphi 0, %s147
      %s149 = sphi 0, %s147
      %s150 = sphi 0, %s149
      %s164 = sphi 0, %s150
      %s168 = sphi 0, %s168
      %s170 = sphi 0, %s168
      %s171 = sphi 0, %s170
      %s185 = sphi 0, %s171
      %s189 = sphi 0, %s189
      %s191 = sphi 0, %s189
      %s192 = sphi 0, %s191
      %s206 = sphi 0, %s192
      %s210 = sphi 0, %s210
      %s212 = sphi 0, %s210
      %s213 = sphi 0, %s212
      %s227 = sphi 0, %s213
      %s231 = sphi 0, %s231
      %s233 = sphi 0, %s231
      %s234 = sphi 0, %s233
      %s248 = sphi 0, %s234
      %s252 = sphi 0, %s252
      %s254 = sphi 0, %s252
      %s255 = sphi 0, %s254
      %s269 = sphi 0, %s255
      %s273 = sphi 0, %s273
      %s275 = sphi 0, %s273
      %s276 = sphi 0, %s275
      %s290 = sphi 0, %s276
      %s294 = sphi 0, %s294
      %s296 = sphi 0, %s294
      %s297 = sphi 0, %s296
      %s311 = sphi 0, %s297
      %s315 = sphi 0, %s315
      %s317 = sphi 0, %s315
      %s318 = sphi 0, %s317
      %s332 = sphi 0, %s318
      %s336 = sphi 0, %s336
      %s338 = sphi 0, %s336
      %s339 = sphi 0, %s338
      %s353 = sphi 0, %s339
      %s357 = sphi 0, %s357
      %s359 = sphi 0, %s357
      %s360 = sphi 0, %s359
      %s374 = sphi 0, %s360
      %s378 = sphi 0, %s378
      %s380 = sphi 0, %s378
      %s381 = sphi 0, %s380
      %s395 = sphi 0, %s381
      %s399 = sphi 0, %s399
      %s401 = sphi 0, %s399
      %s402 = sphi 0, %s401
      %s416 = sphi 0, %s402
      %s420 = sphi 0, %s420
      %s422 = sphi 0, %s420
      %s423 = sphi 0, %s422
      %s437 = sphi 0, %s423
      %s445 = sphi 0, %s447
      %s448 = sphi 0, %s445
      %s449 = sphi 0, %s448
      %s465 = sphi 0, %s449
    $region4: #{tpu_custom_call.1} parent=1 // loop_header_branch
      %34 = sbr.rel (%p32) target = $region8
    $region5: #{tpu_custom_call.1} parent=1 // loop_body
      %s36 = ssub.s32 %s31, 1
      %s37 = ssub.s32 %s31, 2
      %s44 = sadd.s32 1, %s39
      %p45 = scmp.ge.s32.totalorder %s44, 1
      %s46 = scalar_select %p45, 0, %s44
      %s47 = sadd.s32 1, %s38
      %s48 = scalar_select %p45, %s47, %s38
      %p49 = scmp.ge.s32.totalorder %s48, 2
      %s50 = scalar_select %p49, 0, %s48
      %s51 = ssub.s32 %s38, %s50
      %s52 = ssub.s32 %s39, %s46
      %s53 = sor.u32 %s51, %s52
      %p54 = scmp.eq.s32.totalorder %s53, 0
      %s56 = sadd.s32 %s55, 1
      %s57 = scalar_select %p54, %s55, %s56
      %p60 = pneg %p54
      %p61 = scmp.eq.s32.totalorder %s31, 1
      %p62 = por %p60, %p61
      %p63 = scmp.ne.s32.totalorder %s55, %s58
      %p64 = scmp.eq.s32.totalorder %s31, 0
      %p65 = por %p63, %p64
      %p66 = scmp.ne.s32.totalorder %s55, %s58
      %p67 = scmp.eq.s32.totalorder %s36, 1
      %p68 = por %p66, %p67
      %p69 = scmp.ne.s32.totalorder %s58, %s59
      %p70 = scmp.eq.s32.totalorder %s36, 0
      %p71 = por %p69, %p70
      %p72 = scmp.ne.s32.totalorder %s58, %s59
      %p73 = scmp.eq.s32.totalorder %s37, 1
      %p74 = por %p72, %p73
      %p76 = scmp.ne.s32.totalorder %s59, %s75
      %p77 = scmp.eq.s32.totalorder %s37, 0
      %p78 = por %p76, %p77
      %s79 = ssub.s32 %s38, %s50
      %p80 = scmp.eq.s32.totalorder %s79, 0
      %s82 = sadd.s32 %s81, 1
      %s83 = scalar_select %p80, %s81, %s82
      %p86 = pneg %p80
      %p87 = scmp.eq.s32.totalorder %s31, 1
      %p88 = por %p86, %p87
      %p89 = scmp.ne.s32.totalorder %s81, %s84
      %p90 = scmp.eq.s32.totalorder %s31, 0
      %p91 = por %p89, %p90
      %p92 = scmp.ne.s32.totalorder %s81, %s84
      %p93 = scmp.eq.s32.totalorder %s36, 1
      %p94 = por %p92, %p93
      %p95 = scmp.ne.s32.totalorder %s84, %s85
      %p96 = scmp.eq.s32.totalorder %s36, 0
      %p97 = por %p95, %p96
      %p98 = scmp.ne.s32.totalorder %s84, %s85
      %p99 = scmp.eq.s32.totalorder %s37, 1
      %p100 = por %p98, %p99
      %p102 = scmp.ne.s32.totalorder %s85, %s101
      %p103 = scmp.eq.s32.totalorder %s37, 0
      %p104 = por %p102, %p103
      %s106 = sadd.s32 %s105, 1
      %p109 = scmp.eq.s32.totalorder %s31, 1
      %p110 = scmp.ne.s32.totalorder %s105, %s107
      %p111 = scmp.eq.s32.totalorder %s31, 0
      %p112 = por %p110, %p111
      %p113 = scmp.ne.s32.totalorder %s105, %s107
      %p114 = scmp.eq.s32.totalorder %s36, 1
      %p115 = por %p113, %p114
      %p116 = scmp.ne.s32.totalorder %s107, %s108
      %p117 = scmp.eq.s32.totalorder %s36, 0
      %p118 = por %p116, %p117
      %p119 = scmp.ne.s32.totalorder %s107, %s108
      %p120 = scmp.eq.s32.totalorder %s37, 1
      %p121 = por %p119, %p120
      %p123 = scmp.ne.s32.totalorder %s108, %s122
      %p124 = scmp.eq.s32.totalorder %s37, 0
      %p125 = por %p123, %p124
      %s127 = sadd.s32 %s126, 1
      %p130 = scmp.eq.s32.totalorder %s31, 1
      %p131 = scmp.ne.s32.totalorder %s126, %s128
      %p132 = scmp.eq.s32.totalorder %s31, 0
      %p133 = por %p131, %p132
      %p134 = scmp.ne.s32.totalorder %s126, %s128
      %p135 = scmp.eq.s32.totalorder %s36, 1
      %p136 = por %p134, %p135
      %p137 = scmp.ne.s32.totalorder %s128, %s129
      %p138 = scmp.eq.s32.totalorder %s36, 0
      %p139 = por %p137, %p138
      %p140 = scmp.ne.s32.totalorder %s128, %s129
      %p141 = scmp.eq.s32.totalorder %s37, 1
      %p142 = por %p140, %p141
      %p144 = scmp.ne.s32.totalorder %s129, %s143
      %p145 = scmp.eq.s32.totalorder %s37, 0
      %p146 = por %p144, %p145
      %s148 = sadd.s32 %s147, 1
      %p151 = scmp.eq.s32.totalorder %s31, 1
      %p152 = scmp.ne.s32.totalorder %s147, %s149
      %p153 = scmp.eq.s32.totalorder %s31, 0
      %p154 = por %p152, %p153
      %p155 = scmp.ne.s32.totalorder %s147, %s149
      %p156 = scmp.eq.s32.totalorder %s36, 1
      %p157 = por %p155, %p156
      %p158 = scmp.ne.s32.totalorder %s149, %s150
      %p159 = scmp.eq.s32.totalorder %s36, 0
      %p160 = por %p158, %p159
      %p161 = scmp.ne.s32.totalorder %s149, %s150
      %p162 = scmp.eq.s32.totalorder %s37, 1
      %p163 = por %p161, %p162
      %p165 = scmp.ne.s32.totalorder %s150, %s164
      %p166 = scmp.eq.s32.totalorder %s37, 0
      %p167 = por %p165, %p166
      %s169 = sadd.s32 %s168, 1
      %p172 = scmp.eq.s32.totalorder %s31, 1
      %p173 = scmp.ne.s32.totalorder %s168, %s170
      %p174 = scmp.eq.s32.totalorder %s31, 0
      %p175 = por %p173, %p174
      %p176 = scmp.ne.s32.totalorder %s168, %s170
      %p177 = scmp.eq.s32.totalorder %s36, 1
      %p178 = por %p176, %p177
      %p179 = scmp.ne.s32.totalorder %s170, %s171
      %p180 = scmp.eq.s32.totalorder %s36, 0
      %p181 = por %p179, %p180
      %p182 = scmp.ne.s32.totalorder %s170, %s171
      %p183 = scmp.eq.s32.totalorder %s37, 1
      %p184 = por %p182, %p183
      %p186 = scmp.ne.s32.totalorder %s171, %s185
      %p187 = scmp.eq.s32.totalorder %s37, 0
      %p188 = por %p186, %p187
      %s190 = sadd.s32 %s189, 1
      %p193 = scmp.eq.s32.totalorder %s31, 1
      %p194 = scmp.ne.s32.totalorder %s189, %s191
      %p195 = scmp.eq.s32.totalorder %s31, 0
      %p196 = por %p194, %p195
      %p197 = scmp.ne.s32.totalorder %s189, %s191
      %p198 = scmp.eq.s32.totalorder %s36, 1
      %p199 = por %p197, %p198
      %p200 = scmp.ne.s32.totalorder %s191, %s192
      %p201 = scmp.eq.s32.totalorder %s36, 0
      %p202 = por %p200, %p201
      %p203 = scmp.ne.s32.totalorder %s191, %s192
      %p204 = scmp.eq.s32.totalorder %s37, 1
      %p205 = por %p203, %p204
      %p207 = scmp.ne.s32.totalorder %s192, %s206
      %p208 = scmp.eq.s32.totalorder %s37, 0
      %p209 = por %p207, %p208
      %s211 = sadd.s32 %s210, 1
      %p214 = scmp.eq.s32.totalorder %s31, 1
      %p215 = scmp.ne.s32.totalorder %s210, %s212
      %p216 = scmp.eq.s32.totalorder %s31, 0
      %p217 = por %p215, %p216
      %p218 = scmp.ne.s32.totalorder %s210, %s212
      %p219 = scmp.eq.s32.totalorder %s36, 1
      %p220 = por %p218, %p219
      %p221 = scmp.ne.s32.totalorder %s212, %s213
      %p222 = scmp.eq.s32.totalorder %s36, 0
      %p223 = por %p221, %p222
      %p224 = scmp.ne.s32.totalorder %s212, %s213
      %p225 = scmp.eq.s32.totalorder %s37, 1
      %p226 = por %p224, %p225
      %p228 = scmp.ne.s32.totalorder %s213, %s227
      %p229 = scmp.eq.s32.totalorder %s37, 0
      %p230 = por %p228, %p229
      %s232 = sadd.s32 %s231, 1
      %p235 = scmp.eq.s32.totalorder %s31, 1
      %p236 = scmp.ne.s32.totalorder %s231, %s233
      %p237 = scmp.eq.s32.totalorder %s31, 0
      %p238 = por %p236, %p237
      %p239 = scmp.ne.s32.totalorder %s231, %s233
      %p240 = scmp.eq.s32.totalorder %s36, 1
      %p241 = por %p239, %p240
      %p242 = scmp.ne.s32.totalorder %s233, %s234
      %p243 = scmp.eq.s32.totalorder %s36, 0
      %p244 = por %p242, %p243
      %p245 = scmp.ne.s32.totalorder %s233, %s234
      %p246 = scmp.eq.s32.totalorder %s37, 1
      %p247 = por %p245, %p246
      %p249 = scmp.ne.s32.totalorder %s234, %s248
      %p250 = scmp.eq.s32.totalorder %s37, 0
      %p251 = por %p249, %p250
      %s253 = sadd.s32 %s252, 1
      %p256 = scmp.eq.s32.totalorder %s31, 1
      %p257 = scmp.ne.s32.totalorder %s252, %s254
      %p258 = scmp.eq.s32.totalorder %s31, 0
      %p259 = por %p257, %p258
      %p260 = scmp.ne.s32.totalorder %s252, %s254
      %p261 = scmp.eq.s32.totalorder %s36, 1
      %p262 = por %p260, %p261
      %p263 = scmp.ne.s32.totalorder %s254, %s255
      %p264 = scmp.eq.s32.totalorder %s36, 0
      %p265 = por %p263, %p264
      %p266 = scmp.ne.s32.totalorder %s254, %s255
      %p267 = scmp.eq.s32.totalorder %s37, 1
      %p268 = por %p266, %p267
      %p270 = scmp.ne.s32.totalorder %s255, %s269
      %p271 = scmp.eq.s32.totalorder %s37, 0
      %p272 = por %p270, %p271
      %s274 = sadd.s32 %s273, 1
      %p277 = scmp.eq.s32.totalorder %s31, 1
      %p278 = scmp.ne.s32.totalorder %s273, %s275
      %p279 = scmp.eq.s32.totalorder %s31, 0
      %p280 = por %p278, %p279
      %p281 = scmp.ne.s32.totalorder %s273, %s275
      %p282 = scmp.eq.s32.totalorder %s36, 1
      %p283 = por %p281, %p282
      %p284 = scmp.ne.s32.totalorder %s275, %s276
      %p285 = scmp.eq.s32.totalorder %s36, 0
      %p286 = por %p284, %p285
      %p287 = scmp.ne.s32.totalorder %s275, %s276
      %p288 = scmp.eq.s32.totalorder %s37, 1
      %p289 = por %p287, %p288
      %p291 = scmp.ne.s32.totalorder %s276, %s290
      %p292 = scmp.eq.s32.totalorder %s37, 0
      %p293 = por %p291, %p292
      %s295 = sadd.s32 %s294, 1
      %p298 = scmp.eq.s32.totalorder %s31, 1
      %p299 = scmp.ne.s32.totalorder %s294, %s296
      %p300 = scmp.eq.s32.totalorder %s31, 0
      %p301 = por %p299, %p300
      %p302 = scmp.ne.s32.totalorder %s294, %s296
      %p303 = scmp.eq.s32.totalorder %s36, 1
      %p304 = por %p302, %p303
      %p305 = scmp.ne.s32.totalorder %s296, %s297
      %p306 = scmp.eq.s32.totalorder %s36, 0
      %p307 = por %p305, %p306
      %p308 = scmp.ne.s32.totalorder %s296, %s297
      %p309 = scmp.eq.s32.totalorder %s37, 1
      %p310 = por %p308, %p309
      %p312 = scmp.ne.s32.totalorder %s297, %s311
      %p313 = scmp.eq.s32.totalorder %s37, 0
      %p314 = por %p312, %p313
      %s316 = sadd.s32 %s315, 1
      %p319 = scmp.eq.s32.totalorder %s31, 1
      %p320 = scmp.ne.s32.totalorder %s315, %s317
      %p321 = scmp.eq.s32.totalorder %s31, 0
      %p322 = por %p320, %p321
      %p323 = scmp.ne.s32.totalorder %s315, %s317
      %p324 = scmp.eq.s32.totalorder %s36, 1
      %p325 = por %p323, %p324
      %p326 = scmp.ne.s32.totalorder %s317, %s318
      %p327 = scmp.eq.s32.totalorder %s36, 0
      %p328 = por %p326, %p327
      %p329 = scmp.ne.s32.totalorder %s317, %s318
      %p330 = scmp.eq.s32.totalorder %s37, 1
      %p331 = por %p329, %p330
      %p333 = scmp.ne.s32.totalorder %s318, %s332
      %p334 = scmp.eq.s32.totalorder %s37, 0
      %p335 = por %p333, %p334
      %s337 = sadd.s32 %s336, 1
      %p340 = scmp.eq.s32.totalorder %s31, 1
      %p341 = scmp.ne.s32.totalorder %s336, %s338
      %p342 = scmp.eq.s32.totalorder %s31, 0
      %p343 = por %p341, %p342
      %p344 = scmp.ne.s32.totalorder %s336, %s338
      %p345 = scmp.eq.s32.totalorder %s36, 1
      %p346 = por %p344, %p345
      %p347 = scmp.ne.s32.totalorder %s338, %s339
      %p348 = scmp.eq.s32.totalorder %s36, 0
      %p349 = por %p347, %p348
      %p350 = scmp.ne.s32.totalorder %s338, %s339
      %p351 = scmp.eq.s32.totalorder %s37, 1
      %p352 = por %p350, %p351
      %p354 = scmp.ne.s32.totalorder %s339, %s353
      %p355 = scmp.eq.s32.totalorder %s37, 0
      %p356 = por %p354, %p355
      %s358 = sadd.s32 %s357, 1
      %p361 = scmp.eq.s32.totalorder %s31, 1
      %p362 = scmp.ne.s32.totalorder %s357, %s359
      %p363 = scmp.eq.s32.totalorder %s31, 0
      %p364 = por %p362, %p363
      %p365 = scmp.ne.s32.totalorder %s357, %s359
      %p366 = scmp.eq.s32.totalorder %s36, 1
      %p367 = por %p365, %p366
      %p368 = scmp.ne.s32.totalorder %s359, %s360
      %p369 = scmp.eq.s32.totalorder %s36, 0
      %p370 = por %p368, %p369
      %p371 = scmp.ne.s32.totalorder %s359, %s360
      %p372 = scmp.eq.s32.totalorder %s37, 1
      %p373 = por %p371, %p372
      %p375 = scmp.ne.s32.totalorder %s360, %s374
      %p376 = scmp.eq.s32.totalorder %s37, 0
      %p377 = por %p375, %p376
      %s379 = sadd.s32 %s378, 1
      %p382 = scmp.eq.s32.totalorder %s31, 1
      %p383 = scmp.ne.s32.totalorder %s378, %s380
      %p384 = scmp.eq.s32.totalorder %s31, 0
      %p385 = por %p383, %p384
      %p386 = scmp.ne.s32.totalorder %s378, %s380
      %p387 = scmp.eq.s32.totalorder %s36, 1
      %p388 = por %p386, %p387
      %p389 = scmp.ne.s32.totalorder %s380, %s381
      %p390 = scmp.eq.s32.totalorder %s36, 0
      %p391 = por %p389, %p390
      %p392 = scmp.ne.s32.totalorder %s380, %s381
      %p393 = scmp.eq.s32.totalorder %s37, 1
      %p394 = por %p392, %p393
      %p396 = scmp.ne.s32.totalorder %s381, %s395
      %p397 = scmp.eq.s32.totalorder %s37, 0
      %p398 = por %p396, %p397
      %s400 = sadd.s32 %s399, 1
      %p403 = scmp.eq.s32.totalorder %s31, 1
      %p404 = scmp.ne.s32.totalorder %s399, %s401
      %p405 = scmp.eq.s32.totalorder %s31, 0
      %p406 = por %p404, %p405
      %p407 = scmp.ne.s32.totalorder %s399, %s401
      %p408 = scmp.eq.s32.totalorder %s36, 1
      %p409 = por %p407, %p408
      %p410 = scmp.ne.s32.totalorder %s401, %s402
      %p411 = scmp.eq.s32.totalorder %s36, 0
      %p412 = por %p410, %p411
      %p413 = scmp.ne.s32.totalorder %s401, %s402
      %p414 = scmp.eq.s32.totalorder %s37, 1
      %p415 = por %p413, %p414
      %p417 = scmp.ne.s32.totalorder %s402, %s416
      %p418 = scmp.eq.s32.totalorder %s37, 0
      %p419 = por %p417, %p418
      %s421 = sadd.s32 %s420, 1
      %p424 = scmp.eq.s32.totalorder %s31, 1
      %p425 = scmp.ne.s32.totalorder %s420, %s422
      %p426 = scmp.eq.s32.totalorder %s31, 0
      %p427 = por %p425, %p426
      %p428 = scmp.ne.s32.totalorder %s420, %s422
      %p429 = scmp.eq.s32.totalorder %s36, 1
      %p430 = por %p428, %p429
      %p431 = scmp.ne.s32.totalorder %s422, %s423
      %p432 = scmp.eq.s32.totalorder %s36, 0
      %p433 = por %p431, %p432
      %p434 = scmp.ne.s32.totalorder %s422, %s423
      %p435 = scmp.eq.s32.totalorder %s37, 1
      %p436 = por %p434, %p435
      %p438 = scmp.ne.s32.totalorder %s423, %s437
      %p439 = scmp.eq.s32.totalorder %s37, 0
      %p440 = por %p438, %p439
      %s441 = ssub.s32 %s38, %s50
      %s442 = ssub.s32 %s39, %s46
      %s443 = sor.u32 %s441, %s442
      %p444 = scmp.eq.s32.totalorder %s443, 0
      %s446 = sadd.s32 %s445, 1
      %s447 = scalar_select %p444, %s445, %s446
      %p450 = pneg %p444
      %p451 = scmp.eq.s32.totalorder %s31, 1
      %p452 = por %p450, %p451
      %p453 = scmp.ne.s32.totalorder %s445, %s448
      %p454 = scmp.eq.s32.totalorder %s31, 0
      %p455 = por %p453, %p454
      %p456 = scmp.ne.s32.totalorder %s445, %s448
      %p457 = scmp.eq.s32.totalorder %s36, 1
      %p458 = por %p456, %p457
      %p459 = scmp.ne.s32.totalorder %s448, %s449
      %p460 = scmp.eq.s32.totalorder %s36, 0
      %p461 = por %p459, %p460
      %p462 = scmp.ne.s32.totalorder %s448, %s449
      %p463 = scmp.eq.s32.totalorder %s37, 1
      %p464 = por %p462, %p463
      %p466 = scmp.ne.s32.totalorder %s449, %s465
      %p467 = scmp.eq.s32.totalorder %s37, 0
      %p468 = por %p466, %p467
      %p469 = scmp.le.s32.totalorder 1, %s31
      %p470 = scmp.lt.s32.totalorder %s31, 3
      %p471 = pnand %p469, %p470
      %p472 = pneg %p471
      // Predicated region
      $region9: #{tpu_custom_call.1} parent=5 // pred_check
        _
      $region10: #{tpu_custom_call.1} parent=5 // pred_check_branch
        %474 = sbr.rel (%p471) target = $region12
      $region11: #{tpu_custom_call.1} parent=5 // pred_region
        %s475 = ssub.s32 %s31, 1
        // Predicated region
        $region13: #{tpu_custom_call.1} parent=11 // pred_check
          %p476 = pneg %p118
        $region14: #{tpu_custom_call.1} parent=11 // pred_check_branch
          %478 = sbr.rel (%p476) target = $region16
        $region15: #{tpu_custom_call.1} parent=11 // pred_region
          _
        $region16: #{tpu_custom_call.1} parent=11 // pred_fallthru
          _
        // Predicated region
        $region17: #{tpu_custom_call.1} parent=11 // pred_check
          %p479 = pneg %p139
        $region18: #{tpu_custom_call.1} parent=11 // pred_check_branch
          %481 = sbr.rel (%p479) target = $region20
        $region19: #{tpu_custom_call.1} parent=11 // pred_region
          %s483 = ssub.s32 256, 256
          %484 = vsyncadd [#allocation3], %s483
          %s485 = sshll.u32 [#allocation2], 4
          %s486 = int_to_ptr.vmem [resolvable:$true] %s485
          %491 = dma.hbm_to_vmem [thread:$0]  %s3, 256, %s486, [#allocation3], 64, 64, 4
        $region20: #{tpu_custom_call.1} parent=11 // pred_fallthru
          _
        // Predicated region
        $region21: #{tpu_custom_call.1} parent=11 // pred_check
          %p492 = pneg %p160
        $region22: #{tpu_custom_call.1} parent=11 // pred_check_branch
          %494 = sbr.rel (%p492) target = $region24
        $region23: #{tpu_custom_call.1} parent=11 // pred_region
          %s496 = ssub.s32 256, 256
          %497 = vsyncadd [#allocation6], %s496
          %s498 = sshll.u32 [#allocation5], 4
          %s499 = int_to_ptr.vmem [resolvable:$true] %s498
          %504 = dma.hbm_to_vmem [thread:$0]  %s4, 256, %s499, [#allocation6], 64, 64, 4
        $region24: #{tpu_custom_call.1} parent=11 // pred_fallthru
          _
        // Predicated region
        $region25: #{tpu_custom_call.1} parent=11 // pred_check
          %p505 = pneg %p181
        $region26: #{tpu_custom_call.1} parent=11 // pred_check_branch
          %507 = sbr.rel (%p505) target = $region28
        $region27: #{tpu_custom_call.1} parent=11 // pred_region
          %s509 = ssub.s32 16, 16
          %510 = vsyncadd [#allocation6], %s509
          %s512 = sshll.u32 [#allocation7], 4
          %s513 = int_to_ptr.vmem [resolvable:$true] %s512
          %515 = dma.hbm_to_vmem [thread:$0]  %s5, 16, %s513, [#allocation6]
        $region28: #{tpu_custom_call.1} parent=11 // pred_fallthru
          _
        // Predicated region
        $region29: #{tpu_custom_call.1} parent=11 // pred_check
          %p516 = pneg %p202
        $region30: #{tpu_custom_call.1} parent=11 // pred_check_branch
          %518 = sbr.rel (%p516) target = $region32
        $region31: #{tpu_custom_call.1} parent=11 // pred_region
          %s520 = ssub.s32 16, 16
          %521 = vsyncadd [#allocation9], %s520
          %s523 = sshll.u32 [#allocation8], 4
          %s524 = int_to_ptr.vmem [resolvable:$true] %s523
          %526 = dma.hbm_to_vmem [thread:$0]  %s6, 16, %s524, [#allocation9]
        $region32: #{tpu_custom_call.1} parent=11 // pred_fallthru
          _
        // Predicated region
        $region33: #{tpu_custom_call.1} parent=11 // pred_check
          %p527 = pneg %p223
        $region34: #{tpu_custom_call.1} parent=11 // pred_check_branch
          %529 = sbr.rel (%p527) target = $region36
        $region35: #{tpu_custom_call.1} parent=11 // pred_region
          %s531 = ssub.s32 16, 16
          %532 = vsyncadd [#allocation9], %s531
          %s534 = sshll.u32 [#allocation10], 4
          %s535 = int_to_ptr.vmem [resolvable:$true] %s534
          %537 = dma.hbm_to_vmem [thread:$0]  %s7, 16, %s535, [#allocation9]
        $region36: #{tpu_custom_call.1} parent=11 // pred_fallthru
          _
        // Predicated region
        $region37: #{tpu_custom_call.1} parent=11 // pred_check
          %p538 = pneg %p244
        $region38: #{tpu_custom_call.1} parent=11 // pred_check_branch
          %540 = sbr.rel (%p538) target = $region40
        $region39: #{tpu_custom_call.1} parent=11 // pred_region
          %s542 = ssub.s32 256, 256
          %543 = vsyncadd [#allocation12], %s542
          %s544 = sshll.u32 [#allocation11], 4
          %s545 = int_to_ptr.vmem [resolvable:$true] %s544
          %550 = dma.hbm_to_vmem [thread:$0]  %s8, 256, %s545, [#allocation12], 64, 64, 4
        $region40: #{tpu_custom_call.1} parent=11 // pred_fallthru
          _
        // Predicated region
        $region41: #{tpu_custom_call.1} parent=11 // pred_check
          %p551 = pneg %p265
        $region42: #{tpu_custom_call.1} parent=11 // pred_check_branch
          %553 = sbr.rel (%p551) target = $region44
        $region43: #{tpu_custom_call.1} parent=11 // pred_region
          %s555 = ssub.s32 16, 16
          %556 = vsyncadd [#allocation12], %s555
          %s558 = sshll.u32 [#allocation13], 4
          %s559 = int_to_ptr.vmem [resolvable:$true] %s558
          %561 = dma.hbm_to_vmem [thread:$0]  %s9, 16, %s559, [#allocation12]
        $region44: #{tpu_custom_call.1} parent=11 // pred_fallthru
          _
        // Predicated region
        $region45: #{tpu_custom_call.1} parent=11 // pred_check
          %p562 = pneg %p286
        $region46: #{tpu_custom_call.1} parent=11 // pred_check_branch
          %564 = sbr.rel (%p562) target = $region48
        $region47: #{tpu_custom_call.1} parent=11 // pred_region
          _
        $region48: #{tpu_custom_call.1} parent=11 // pred_fallthru
          _
        // Predicated region
        $region49: #{tpu_custom_call.1} parent=11 // pred_check
          %p565 = pneg %p307
        $region50: #{tpu_custom_call.1} parent=11 // pred_check_branch
          %567 = sbr.rel (%p565) target = $region52
        $region51: #{tpu_custom_call.1} parent=11 // pred_region
          _
        $region52: #{tpu_custom_call.1} parent=11 // pred_fallthru
          _
        // Predicated region
        $region53: #{tpu_custom_call.1} parent=11 // pred_check
          %p568 = pneg %p328
        $region54: #{tpu_custom_call.1} parent=11 // pred_check_branch
          %570 = sbr.rel (%p568) target = $region56
        $region55: #{tpu_custom_call.1} parent=11 // pred_region
          _
        $region56: #{tpu_custom_call.1} parent=11 // pred_fallthru
          _
        // Predicated region
        $region57: #{tpu_custom_call.1} parent=11 // pred_check
          %p571 = pneg %p349
        $region58: #{tpu_custom_call.1} parent=11 // pred_check_branch
          %573 = sbr.rel (%p571) target = $region60
        $region59: #{tpu_custom_call.1} parent=11 // pred_region
          _
        $region60: #{tpu_custom_call.1} parent=11 // pred_fallthru
          _
        // Predicated region
        $region61: #{tpu_custom_call.1} parent=11 // pred_check
          %p574 = pneg %p370
        $region62: #{tpu_custom_call.1} parent=11 // pred_check_branch
          %576 = sbr.rel (%p574) target = $region64
        $region63: #{tpu_custom_call.1} parent=11 // pred_region
          _
        $region64: #{tpu_custom_call.1} parent=11 // pred_fallthru
          _
        // Predicated region
        $region65: #{tpu_custom_call.1} parent=11 // pred_check
          %p577 = pneg %p391
        $region66: #{tpu_custom_call.1} parent=11 // pred_check_branch
          %579 = sbr.rel (%p577) target = $region68
        $region67: #{tpu_custom_call.1} parent=11 // pred_region
          _
        $region68: #{tpu_custom_call.1} parent=11 // pred_fallthru
          _
        // Predicated region
        $region69: #{tpu_custom_call.1} parent=11 // pred_check
          %p580 = pneg %p412
        $region70: #{tpu_custom_call.1} parent=11 // pred_check_branch
          %582 = sbr.rel (%p580) target = $region72
        $region71: #{tpu_custom_call.1} parent=11 // pred_region
          _
        $region72: #{tpu_custom_call.1} parent=11 // pred_fallthru
          _
        // Predicated region
        $region73: #{tpu_custom_call.1} parent=11 // pred_check
          %p583 = pneg %p433
        $region74: #{tpu_custom_call.1} parent=11 // pred_check_branch
          %585 = sbr.rel (%p583) target = $region76
        $region75: #{tpu_custom_call.1} parent=11 // pred_region
          _
        $region76: #{tpu_custom_call.1} parent=11 // pred_fallthru
          _
      $region12: #{tpu_custom_call.1} parent=5 // pred_fallthru
        _
      %p586 = scmp.lt.s32.totalorder %s31, 2
      // Predicated region
      $region77: #{tpu_custom_call.1} parent=5 // pred_check
        %p587 = pneg %p586
      $region78: #{tpu_custom_call.1} parent=5 // pred_check_branch
        %589 = sbr.rel (%p587) target = $region80
      $region79: #{tpu_custom_call.1} parent=5 // pred_region
        // Predicated region
        $region81: #{tpu_custom_call.1} parent=79 // pred_check
          %p590 = pneg %p65
        $region82: #{tpu_custom_call.1} parent=79 // pred_check_branch
          %592 = sbr.rel (%p590) target = $region84
        $region83: #{tpu_custom_call.1} parent=79 // pred_region
          %p593 = scmp.lt.s32.totalorder %s38, 1
          %s594 = scalar_select %p593, %s38, 1
          %p595 = scmp.lt.s32.totalorder %s39, 0
          %s596 = scalar_select %p595, %s39, 0
          %s597 = sadd.s32 %s596, %s594
          %s598 = smul.addr %s597, 8
          %s599 = scalar_lea.vmem %s0, %s598
        $region84: #{tpu_custom_call.1} parent=79 // pred_fallthru
          _
        // Predicated region
        $region85: #{tpu_custom_call.1} parent=79 // pred_check
          %p600 = pneg %p91
        $region86: #{tpu_custom_call.1} parent=79 // pred_check_branch
          %602 = sbr.rel (%p600) target = $region88
        $region87: #{tpu_custom_call.1} parent=79 // pred_region
          %p603 = scmp.lt.s32.totalorder %s38, 1
          %s604 = scalar_select %p603, %s38, 1
          %s605 = smul.addr %s604, 8
          %s606 = scalar_lea.vmem %s1, %s605
        $region88: #{tpu_custom_call.1} parent=79 // pred_fallthru
          _
      $region80: #{tpu_custom_call.1} parent=5 // pred_fallthru
        _
      %p607 = scmp.le.s32.totalorder 1, %s31
      %p608 = scmp.lt.s32.totalorder %s31, 3
      %p609 = pnand %p607, %p608
      %p610 = pneg %p609
      // Predicated region
      $region89: #{tpu_custom_call.1} parent=5 // pred_check
        _
      $region90: #{tpu_custom_call.1} parent=5 // pred_check_branch
        %612 = sbr.rel (%p609) target = $region92
      $region91: #{tpu_custom_call.1} parent=5 // pred_region
        %s613 = ssub.s32 %s31, 1
        // Predicated region
        $region93: #{tpu_custom_call.1} parent=91 // pred_check
          %p614 = pneg %p139
        $region94: #{tpu_custom_call.1} parent=91 // pred_check_branch
          %616 = sbr.rel (%p614) target = $region96
        $region95: #{tpu_custom_call.1} parent=91 // pred_region
          %617 = dma.done [#allocation3], 256
        $region96: #{tpu_custom_call.1} parent=91 // pred_fallthru
          _
        // Predicated region
        $region97: #{tpu_custom_call.1} parent=91 // pred_check
          %p618 = pneg %p160
        $region98: #{tpu_custom_call.1} parent=91 // pred_check_branch
          %620 = sbr.rel (%p618) target = $region100
        $region99: #{tpu_custom_call.1} parent=91 // pred_region
          %621 = dma.done [#allocation6], 256
        $region100: #{tpu_custom_call.1} parent=91 // pred_fallthru
          _
        // Predicated region
        $region101: #{tpu_custom_call.1} parent=91 // pred_check
          %p622 = pneg %p181
        $region102: #{tpu_custom_call.1} parent=91 // pred_check_branch
          %624 = sbr.rel (%p622) target = $region104
        $region103: #{tpu_custom_call.1} parent=91 // pred_region
          %625 = dma.done [#allocation6], 16
        $region104: #{tpu_custom_call.1} parent=91 // pred_fallthru
          _
        // Predicated region
        $region105: #{tpu_custom_call.1} parent=91 // pred_check
          %p626 = pneg %p202
        $region106: #{tpu_custom_call.1} parent=91 // pred_check_branch
          %628 = sbr.rel (%p626) target = $region108
        $region107: #{tpu_custom_call.1} parent=91 // pred_region
          %629 = dma.done [#allocation9], 16
        $region108: #{tpu_custom_call.1} parent=91 // pred_fallthru
          _
        // Predicated region
        $region109: #{tpu_custom_call.1} parent=91 // pred_check
          %p630 = pneg %p223
        $region110: #{tpu_custom_call.1} parent=91 // pred_check_branch
          %632 = sbr.rel (%p630) target = $region112
        $region111: #{tpu_custom_call.1} parent=91 // pred_region
          %633 = dma.done [#allocation9], 16
        $region112: #{tpu_custom_call.1} parent=91 // pred_fallthru
          _
        // Predicated region
        $region113: #{tpu_custom_call.1} parent=91 // pred_check
          %p634 = pneg %p244
        $region114: #{tpu_custom_call.1} parent=91 // pred_check_branch
          %636 = sbr.rel (%p634) target = $region116
        $region115: #{tpu_custom_call.1} parent=91 // pred_region
          %637 = dma.done [#allocation12], 256
        $region116: #{tpu_custom_call.1} parent=91 // pred_fallthru
          _
        // Predicated region
        $region117: #{tpu_custom_call.1} parent=91 // pred_check
          %p638 = pneg %p265
        $region118: #{tpu_custom_call.1} parent=91 // pred_check_branch
          %640 = sbr.rel (%p638) target = $region120
        $region119: #{tpu_custom_call.1} parent=91 // pred_region
          %641 = dma.done [#allocation12], 16
        $region120: #{tpu_custom_call.1} parent=91 // pred_fallthru
          _
        %p642 = scmp.lt.s32.totalorder %s40, 1
        %s643 = scalar_select %p642, %s40, 1
        %p644 = scmp.lt.s32.totalorder %s41, 0
        %s645 = scalar_select %p644, %s41, 0
        %s646 = sadd.s32 %s645, %s643
        %s647 = smul.addr %s646, 8
        %s648 = scalar_lea.vmem %s0, %s647
        %p649 = pneg %p71
        %p650 = pneg %p68
        %p651 = scmp.lt.s32.totalorder %s40, 1
        %s652 = scalar_select %p651, %s40, 1
        %s653 = smul.addr %s652, 8
        %s654 = scalar_lea.vmem %s1, %s653
        %p655 = pneg %p97
        %p656 = pneg %p94
        %p657 = pneg %p118
        %p658 = pneg %p115
        %p659 = pneg %p139
        %p660 = pneg %p136
        %p661 = pneg %p160
        %p662 = pneg %p157
        %p663 = pneg %p181
        %p664 = pneg %p178
        %p665 = pneg %p202
        %p666 = pneg %p199
        %p667 = pneg %p223
        %p668 = pneg %p220
        %p669 = pneg %p244
        %p670 = pneg %p241
        %p671 = pneg %p265
        %p672 = pneg %p262
        %p673 = pneg %p286
        %p674 = pneg %p283
        %p675 = pneg %p307
        %p676 = pneg %p304
        %p677 = pneg %p328
        %p678 = pneg %p325
        %p679 = pneg %p349
        %p680 = pneg %p346
        %p681 = pneg %p370
        %p682 = pneg %p367
        %p683 = pneg %p391
        %p684 = pneg %p388
        %p685 = pneg %p412
        %p686 = pneg %p409
        %p687 = pneg %p433
        %p688 = pneg %p430
        %p689 = pneg %p461
        %p690 = pneg %p458
        %s691 = sand.u32 %s448, 1
        %s692 = scalar_lea.sflag [#allocation4], %s691
        %s693 = sand.u32 %s448, 1
        %s694 = smul.addr %s693, 8
        %s695 = scalar_lea.vmem [#allocation14], %s694
        %p696 = scmp.lt.s32.totalorder %s40, 1
        %s697 = scalar_select %p696, %s40, 1
        %p698 = scmp.lt.s32.totalorder %s41, 0
        %s699 = scalar_select %p698, %s41, 0
        %s700 = sadd.s32 %s699, %s697
        %s701 = smul.addr %s700, 8
        %s702 = scalar_lea.vmem %s0, %s701
        %p703 = scmp.lt.s32.totalorder %s40, 1
        %s704 = scalar_select %p703, %s40, 1
        %s705 = smul.addr %s704, 8
        %s706 = scalar_lea.vmem %s1, %s705
        %v708 = vld [vmem:[%s702] sm:$0xff]
        %v709 = vld [vmem:[%s706] sm:$0xff]
        %v710 = vpack.c.bf16 %v708, %v708
        %v711 = vpack.c.bf16 %v709, %v709
        %v712 = vld [vmem:[%s2] sm:$0xf]
        %v713 = vld [vmem:[%s2 + $0x4] sm:$0xf]
        %v714 = vld [vmem:[%s2 + $0x8] sm:$0xf]
        %v715 = vld [vmem:[%s2 + $0xc] sm:$0xf]
        %v716 = vld [vmem:[#allocation7] sm:$0x1]
        %v718 = vlaneseq
        %v719 = vshrl.u32 %v718, 7
        %v720 = vsub.s32 0, %v719
        %v721 = vrot.slane %v716, %v720
        %v727 = vunpack.c.l.b16 %v712
        %v728 = vunpack.c.l.b16 %v713
        %v729 = vunpack.c.l.b16 %v714
        %v730 = vunpack.c.l.b16 %v715
        %v731 = vpack.c.b16 %v728, %v727
        %v732 = vpack.c.b16 %v730, %v729
        %vm735 = vcmask 261120
        %v737 = vsel %vm735, %v710, 0
        %739 = vmatprep.subr.bf16.mxu0 0
        %740 = vmatpush1.bf16.msra.mxu0 0
        %741 = vmatprep.subr.bf16.mxu0 0
        %742 = vmatpush1.bf16.msra.mxu0 0
        %743 = vmatprep.subr.bf16.mxu0 0
        %744 = vmatpush1.bf16.msra.mxu0 0
        %745 = vmatprep.subr.bf16.mxu0 0
        %746 = vmatpush1.bf16.msra.mxu0 0
        %747 = vmatprep.subr.bf16.mxu0 0
        %748 = vmatpush1.bf16.msra.mxu0 0
        %749 = vmatprep.subr.bf16.mxu0 0
        %750 = vmatpush1.bf16.msra.mxu0 0
        %751 = vmatprep.subr.bf16.mxu0 0
        %752 = vmatpush1.bf16.msra.mxu0 %v732
        %753 = vmatprep.subr.bf16.mxu0 0
        %754 = vmatpush1.bf16.msra.mxu0 %v731
        %755 = vmatprep.subr.bf16.mxu0 0
        %756 = vmatpush2.bf16.msra.mxu0 0
        %757 = vmatprep.subr.bf16.mxu0 0
        %758 = vmatpush2.bf16.msra.mxu0 0
        %759 = vmatprep.subr.bf16.mxu0 0
        %760 = vmatpush2.bf16.msra.mxu0 0
        %761 = vmatprep.subr.bf16.mxu0 0
        %762 = vmatpush2.bf16.msra.mxu0 0
        %763 = vmatprep.subr.bf16.mxu0 0
        %764 = vmatpush2.bf16.msra.mxu0 0
        %765 = vmatprep.subr.bf16.mxu0 0
        %766 = vmatpush2.bf16.msra.mxu0 0
        %767 = vmatprep.subr.bf16.mxu0 0
        %768 = vmatpush2.bf16.msra.mxu0 0
        %769 = vmatprep.subr.bf16.mxu0 0
        %770 = vmatpush2.bf16.msra.mxu0 0
        %771 = vmatprep.mubr.bf16.mxu0 0
        %772 = vmatmul.mubr.bf16.gmra.mxu0 %v737
        %v773 = vpop.f32.mrf.mxu0
        %v774 = vadd.f32 %v721, %v773
        %v775 = vpop.f32.mrf.mxu0
        %v776 = vpop.f32.mrf.mxu0
        %v777 = vpop.f32.mrf.mxu0
        %778 = vdwg.mxu0
        %v779 = vld [vmem:[#allocation2] sm:$0xf]
        %v780 = vld [vmem:[#allocation2 + $0x4] sm:$0xf]
        %v781 = vld [vmem:[#allocation2 + $0x8] sm:$0xf]
        %v782 = vld [vmem:[#allocation2 + $0xc] sm:$0xf]
        %v783 = vld [vmem:[#allocation8] sm:$0x1]
        %v785 = vlaneseq
        %v786 = vshrl.u32 %v785, 7
        %v787 = vsub.s32 0, %v786
        %v788 = vrot.slane %v783, %v787
        %v794 = vunpack.c.l.b16 %v779
        %v795 = vunpack.c.l.b16 %v780
        %v796 = vunpack.c.l.b16 %v781
        %v797 = vunpack.c.l.b16 %v782
        %v798 = vpack.c.b16 %v795, %v794
        %v799 = vpack.c.b16 %v797, %v796
        %v803 = vsel %vm735, %v711, 0
        %805 = vmatprep.subr.bf16.mxu0 0
        %806 = vmatpush1.bf16.msra.mxu0 0
        %807 = vmatprep.subr.bf16.mxu0 0
        %808 = vmatpush1.bf16.msra.mxu0 0
        %809 = vmatprep.subr.bf16.mxu0 0
        %810 = vmatpush1.bf16.msra.mxu0 0
        %811 = vmatprep.subr.bf16.mxu0 0
        %812 = vmatpush1.bf16.msra.mxu0 0
        %813 = vmatprep.subr.bf16.mxu0 0
        %814 = vmatpush1.bf16.msra.mxu0 0
        %815 = vmatprep.subr.bf16.mxu0 0
        %816 = vmatpush1.bf16.msra.mxu0 0
        %817 = vmatprep.subr.bf16.mxu0 0
        %818 = vmatpush1.bf16.msra.mxu0 %v799
        %819 = vmatprep.subr.bf16.mxu0 0
        %820 = vmatpush1.bf16.msra.mxu0 %v798
        %821 = vmatprep.subr.bf16.mxu0 0
        %822 = vmatpush2.bf16.msra.mxu0 0
        %823 = vmatprep.subr.bf16.mxu0 0
        %824 = vmatpush2.bf16.msra.mxu0 0
        %825 = vmatprep.subr.bf16.mxu0 0
        %826 = vmatpush2.bf16.msra.mxu0 0
        %827 = vmatprep.subr.bf16.mxu0 0
        %828 = vmatpush2.bf16.msra.mxu0 0
        %829 = vmatprep.subr.bf16.mxu0 0
        %830 = vmatpush2.bf16.msra.mxu0 0
        %831 = vmatprep.subr.bf16.mxu0 0
        %832 = vmatpush2.bf16.msra.mxu0 0
        %833 = vmatprep.subr.bf16.mxu0 0
        %834 = vmatpush2.bf16.msra.mxu0 0
        %835 = vmatprep.subr.bf16.mxu0 0
        %836 = vmatpush2.bf16.msra.mxu0 0
        %837 = vmatprep.mubr.bf16.mxu0 0
        %838 = vmatmul.mubr.bf16.gmra.mxu0 %v803
        %v839 = vpop.f32.mrf.mxu0
        %v840 = vadd.f32 %v788, %v839
        %v841 = vpop.f32.mrf.mxu0
        %v842 = vpop.f32.mrf.mxu0
        %v843 = vpop.f32.mrf.mxu0
        %844 = vdwg.mxu0
        %v845 = vld [vmem:[#allocation5] sm:$0xf]
        %v846 = vld [vmem:[#allocation5 + $0x4] sm:$0xf]
        %v847 = vld [vmem:[#allocation5 + $0x8] sm:$0xf]
        %v848 = vld [vmem:[#allocation5 + $0xc] sm:$0xf]
        %v849 = vld [vmem:[#allocation10] sm:$0x1]
        %v851 = vlaneseq
        %v852 = vshrl.u32 %v851, 7
        %v853 = vsub.s32 0, %v852
        %v854 = vrot.slane %v849, %v853
        %v860 = vunpack.c.l.b16 %v845
        %v861 = vunpack.c.l.b16 %v846
        %v862 = vunpack.c.l.b16 %v847
        %v863 = vunpack.c.l.b16 %v848
        %v864 = vpack.c.b16 %v861, %v860
        %v865 = vpack.c.b16 %v863, %v862
        %868 = vmatprep.subr.bf16.mxu0 0
        %869 = vmatpush1.bf16.msra.mxu0 0
        %870 = vmatprep.subr.bf16.mxu0 0
        %871 = vmatpush1.bf16.msra.mxu0 0
        %872 = vmatprep.subr.bf16.mxu0 0
        %873 = vmatpush1.bf16.msra.mxu0 0
        %874 = vmatprep.subr.bf16.mxu0 0
        %875 = vmatpush1.bf16.msra.mxu0 0
        %876 = vmatprep.subr.bf16.mxu0 0
        %877 = vmatpush1.bf16.msra.mxu0 0
        %878 = vmatprep.subr.bf16.mxu0 0
        %879 = vmatpush1.bf16.msra.mxu0 0
        %880 = vmatprep.subr.bf16.mxu0 0
        %881 = vmatpush1.bf16.msra.mxu0 %v865
        %882 = vmatprep.subr.bf16.mxu0 0
        %883 = vmatpush1.bf16.msra.mxu0 %v864
        %884 = vmatprep.subr.bf16.mxu0 0
        %885 = vmatpush2.bf16.msra.mxu0 0
        %886 = vmatprep.subr.bf16.mxu0 0
        %887 = vmatpush2.bf16.msra.mxu0 0
        %888 = vmatprep.subr.bf16.mxu0 0
        %889 = vmatpush2.bf16.msra.mxu0 0
        %890 = vmatprep.subr.bf16.mxu0 0
        %891 = vmatpush2.bf16.msra.mxu0 0
        %892 = vmatprep.subr.bf16.mxu0 0
        %893 = vmatpush2.bf16.msra.mxu0 0
        %894 = vmatprep.subr.bf16.mxu0 0
        %895 = vmatpush2.bf16.msra.mxu0 0
        %896 = vmatprep.subr.bf16.mxu0 0
        %897 = vmatpush2.bf16.msra.mxu0 0
        %898 = vmatprep.subr.bf16.mxu0 0
        %899 = vmatpush2.bf16.msra.mxu0 0
        %900 = vmatprep.mubr.bf16.mxu0 0
        %901 = vmatmul.mubr.bf16.gmra.mxu0 %v803
        %v902 = vpop.f32.mrf.mxu0
        %v903 = vadd.f32 %v854, %v902
        %v904 = vpop.f32.mrf.mxu0
        %v905 = vpop.f32.mrf.mxu0
        %v906 = vpop.f32.mrf.mxu0
        %907 = vdwg.mxu0
        %v908 = vmul.f32 %v774, 0.35355338
        %910 = vrot.lane.b32.xlu0 %v908, 120
        %v911 = vpop.permute.xlu0 %910
        %913 = vrot.lane.b32.xlu0 %v908, 112
        %v914 = vpop.permute.xlu0 %913
        %916 = vrot.lane.b32.xlu0 %v908, 104
        %v917 = vpop.permute.xlu0 %916
        %v919 = vcombine.low %v908, %v914
        %v920 = vcombine.high %v908, %v914
        %v922 = vunpack.c.l.s4 1983009808
        %v923 = vunpack.c.0.s8 %v922
        %v924 = vlaneseq
        %v925 = vshrl.u32 %v924, 7
        %v926 = vsub.s32 %v923, %v925
        %v927 = vrot.slane %v919, %v926
        %v929 = vunpack.c.l.s4 1983009808
        %v930 = vunpack.c.0.s8 %v929
        %v931 = vlaneseq
        %v932 = vshrl.u32 %v931, 7
        %v933 = vsub.s32 %v930, %v932
        %v934 = vrot.slane %v920, %v933
        %v935 = vcombine.low %v911, %v917
        %v936 = vcombine.high %v911, %v917
        %v938 = vunpack.c.l.s4 1983009808
        %v939 = vunpack.c.0.s8 %v938
        %v940 = vlaneseq
        %v941 = vshrl.u32 %v940, 7
        %v942 = vsub.s32 %v939, %v941
        %v943 = vrot.slane %v935, %v942
        %v945 = vunpack.c.l.s4 1983009808
        %v946 = vunpack.c.0.s8 %v945
        %v947 = vlaneseq
        %v948 = vshrl.u32 %v947, 7
        %v949 = vsub.s32 %v946, %v948
        %v950 = vrot.slane %v936, %v949
        %v951 = vcombine.low %v927, %v943
        %v952 = vcombine.high %v927, %v943
        %v954 = vunpack.c.l.s4 1934713408
        %v955 = vunpack.c.0.s8 %v954
        %v956 = vlaneseq
        %v957 = vshrl.u32 %v956, 7
        %v958 = vsub.s32 %v955, %v957
        %v959 = vrot.slane %v951, %v958
        %v961 = vunpack.c.l.s4 1934713408
        %v962 = vunpack.c.0.s8 %v961
        %v963 = vlaneseq
        %v964 = vshrl.u32 %v963, 7
        %v965 = vsub.s32 %v962, %v964
        %v966 = vrot.slane %v952, %v965
        %v967 = vcombine.low %v934, %v950
        %v968 = vcombine.high %v934, %v950
        %v970 = vunpack.c.l.s4 1934713408
        %v971 = vunpack.c.0.s8 %v970
        %v972 = vlaneseq
        %v973 = vshrl.u32 %v972, 7
        %v974 = vsub.s32 %v971, %v973
        %v975 = vrot.slane %v967, %v974
        %v977 = vunpack.c.l.s4 1934713408
        %v978 = vunpack.c.0.s8 %v977
        %v979 = vlaneseq
        %v980 = vshrl.u32 %v979, 7
        %v981 = vsub.s32 %v978, %v980
        %v982 = vrot.slane %v968, %v981
        %v983 = vcombine.high %v959, 0.0
        %v984 = vcombine.high %v966, 0.0
        %v985 = vcombine.high %v975, 0.0
        %v986 = vcombine.high %v982, 0.0
        %v987 = vpack.c.bf16 %v959, %v959
        %v988 = vpack.c.bf16 %v983, %v983
        %v989 = vpack.c.bf16 %v966, %v966
        %v990 = vpack.c.bf16 %v984, %v984
        %v991 = vpack.c.bf16 %v975, %v975
        %v992 = vpack.c.bf16 %v985, %v985
        %v993 = vpack.c.bf16 %v982, %v982
        %v994 = vpack.c.bf16 %v986, %v986
        %v995 = vcombine.low %v987, %v991
        %v997 = vunpack.c.l.s4 1983009808
        %v998 = vunpack.c.0.s8 %v997
        %v999 = vlaneseq
        %v1000 = vshrl.u32 %v999, 7
        %v1001 = vsub.s32 %v998, %v1000
        %v1002 = vrot.slane %v995, %v1001
        %v1003 = vcombine.low %v989, %v993
        %v1005 = vunpack.c.l.s4 1983009808
        %v1006 = vunpack.c.0.s8 %v1005
        %v1007 = vlaneseq
        %v1008 = vshrl.u32 %v1007, 7
        %v1009 = vsub.s32 %v1006, %v1008
        %v1010 = vrot.slane %v1003, %v1009
        %v1011 = vcombine.low %v1002, %v1010
        %v1013 = vunpack.c.l.s4 1934713408
        %v1014 = vunpack.c.0.s8 %v1013
        %v1015 = vlaneseq
        %v1016 = vshrl.u32 %v1015, 7
        %v1017 = vsub.s32 %v1014, %v1016
        %v1018 = vrot.slane %v1011, %v1017
        %v1019 = vcombine.high %v1018, 0
        %v1020 = vcombine.low %v988, %v992
        %v1022 = vunpack.c.l.s4 1983009808
        %v1023 = vunpack.c.0.s8 %v1022
        %v1024 = vlaneseq
        %v1025 = vshrl.u32 %v1024, 7
        %v1026 = vsub.s32 %v1023, %v1025
        %v1027 = vrot.slane %v1020, %v1026
        %v1028 = vcombine.low %v990, %v994
        %v1030 = vunpack.c.l.s4 1983009808
        %v1031 = vunpack.c.0.s8 %v1030
        %v1032 = vlaneseq
        %v1033 = vshrl.u32 %v1032, 7
        %v1034 = vsub.s32 %v1031, %v1033
        %v1035 = vrot.slane %v1028, %v1034
        %v1036 = vcombine.low %v1027, %v1035
        %v1038 = vunpack.c.l.s4 1934713408
        %v1039 = vunpack.c.0.s8 %v1038
        %v1040 = vlaneseq
        %v1041 = vshrl.u32 %v1040, 7
        %v1042 = vsub.s32 %v1039, %v1041
        %v1043 = vrot.slane %v1036, %v1042
        %v1044 = vcombine.high %v1043, 0
        %v1047 = vpack.i.b16 %v1043, %v1018
        %v1048 = vshrl.u32 %v1018, 16
        %v1049 = vshrl.u32 %v1043, 16
        %v1050 = vpack.i.b16 %v1049, %v1048
        %v1053 = vpack.i.b16 %v1044, %v1019
        %v1054 = vshrl.u32 %v1019, 16
        %v1055 = vshrl.u32 %v1044, 16
        %v1056 = vpack.i.b16 %v1055, %v1054
        %1058 = vrot.lane.b32.xlu0 %v840, 120
        %v1059 = vpop.permute.xlu0 %1058
        %1061 = vrot.lane.b32.xlu0 %v840, 112
        %v1062 = vpop.permute.xlu0 %1061
        %1064 = vrot.lane.b32.xlu0 %v840, 104
        %v1065 = vpop.permute.xlu0 %1064
        %v1067 = vcombine.low %v840, %v1062
        %v1068 = vcombine.high %v840, %v1062
        %v1070 = vunpack.c.l.s4 1983009808
        %v1071 = vunpack.c.0.s8 %v1070
        %v1072 = vlaneseq
        %v1073 = vshrl.u32 %v1072, 7
        %v1074 = vsub.s32 %v1071, %v1073
        %v1075 = vrot.slane %v1067, %v1074
        %v1077 = vunpack.c.l.s4 1983009808
        %v1078 = vunpack.c.0.s8 %v1077
        %v1079 = vlaneseq
        %v1080 = vshrl.u32 %v1079, 7
        %v1081 = vsub.s32 %v1078, %v1080
        %v1082 = vrot.slane %v1068, %v1081
        %v1083 = vcombine.low %v1059, %v1065
        %v1084 = vcombine.high %v1059, %v1065
        %v1086 = vunpack.c.l.s4 1983009808
        %v1087 = vunpack.c.0.s8 %v1086
        %v1088 = vlaneseq
        %v1089 = vshrl.u32 %v1088, 7
        %v1090 = vsub.s32 %v1087, %v1089
        %v1091 = vrot.slane %v1083, %v1090
        %v1093 = vunpack.c.l.s4 1983009808
        %v1094 = vunpack.c.0.s8 %v1093
        %v1095 = vlaneseq
        %v1096 = vshrl.u32 %v1095, 7
        %v1097 = vsub.s32 %v1094, %v1096
        %v1098 = vrot.slane %v1084, %v1097
        %v1099 = vcombine.low %v1075, %v1091
        %v1100 = vcombine.high %v1075, %v1091
        %v1102 = vunpack.c.l.s4 1934713408
        %v1103 = vunpack.c.0.s8 %v1102
        %v1104 = vlaneseq
        %v1105 = vshrl.u32 %v1104, 7
        %v1106 = vsub.s32 %v1103, %v1105
        %v1107 = vrot.slane %v1099, %v1106
        %v1109 = vunpack.c.l.s4 1934713408
        %v1110 = vunpack.c.0.s8 %v1109
        %v1111 = vlaneseq
        %v1112 = vshrl.u32 %v1111, 7
        %v1113 = vsub.s32 %v1110, %v1112
        %v1114 = vrot.slane %v1100, %v1113
        %v1115 = vcombine.low %v1082, %v1098
        %v1116 = vcombine.high %v1082, %v1098
        %v1118 = vunpack.c.l.s4 1934713408
        %v1119 = vunpack.c.0.s8 %v1118
        %v1120 = vlaneseq
        %v1121 = vshrl.u32 %v1120, 7
        %v1122 = vsub.s32 %v1119, %v1121
        %v1123 = vrot.slane %v1115, %v1122
        %v1125 = vunpack.c.l.s4 1934713408
        %v1126 = vunpack.c.0.s8 %v1125
        %v1127 = vlaneseq
        %v1128 = vshrl.u32 %v1127, 7
        %v1129 = vsub.s32 %v1126, %v1128
        %v1130 = vrot.slane %v1116, %v1129
        %v1131 = vcombine.high %v1107, 0.0
        %v1132 = vcombine.high %v1114, 0.0
        %v1133 = vcombine.high %v1123, 0.0
        %v1134 = vcombine.high %v1130, 0.0
        %v1135 = vpack.c.bf16 %v1107, %v1107
        %v1136 = vpack.c.bf16 %v1131, %v1131
        %v1137 = vpack.c.bf16 %v1114, %v1114
        %v1138 = vpack.c.bf16 %v1132, %v1132
        %v1139 = vpack.c.bf16 %v1123, %v1123
        %v1140 = vpack.c.bf16 %v1133, %v1133
        %v1141 = vpack.c.bf16 %v1130, %v1130
        %v1142 = vpack.c.bf16 %v1134, %v1134
        %v1143 = vcombine.low %v1135, %v1139
        %v1145 = vunpack.c.l.s4 1983009808
        %v1146 = vunpack.c.0.s8 %v1145
        %v1147 = vlaneseq
        %v1148 = vshrl.u32 %v1147, 7
        %v1149 = vsub.s32 %v1146, %v1148
        %v1150 = vrot.slane %v1143, %v1149
        %v1151 = vcombine.low %v1137, %v1141
        %v1153 = vunpack.c.l.s4 1983009808
        %v1154 = vunpack.c.0.s8 %v1153
        %v1155 = vlaneseq
        %v1156 = vshrl.u32 %v1155, 7
        %v1157 = vsub.s32 %v1154, %v1156
        %v1158 = vrot.slane %v1151, %v1157
        %v1159 = vcombine.low %v1150, %v1158
        %v1161 = vunpack.c.l.s4 1934713408
        %v1162 = vunpack.c.0.s8 %v1161
        %v1163 = vlaneseq
        %v1164 = vshrl.u32 %v1163, 7
        %v1165 = vsub.s32 %v1162, %v1164
        %v1166 = vrot.slane %v1159, %v1165
        %v1167 = vcombine.high %v1166, 0
        %v1168 = vcombine.low %v1136, %v1140
        %v1170 = vunpack.c.l.s4 1983009808
        %v1171 = vunpack.c.0.s8 %v1170
        %v1172 = vlaneseq
        %v1173 = vshrl.u32 %v1172, 7
        %v1174 = vsub.s32 %v1171, %v1173
        %v1175 = vrot.slane %v1168, %v1174
        %v1176 = vcombine.low %v1138, %v1142
        %v1178 = vunpack.c.l.s4 1983009808
        %v1179 = vunpack.c.0.s8 %v1178
        %v1180 = vlaneseq
        %v1181 = vshrl.u32 %v1180, 7
        %v1182 = vsub.s32 %v1179, %v1181
        %v1183 = vrot.slane %v1176, %v1182
        %v1184 = vcombine.low %v1175, %v1183
        %v1186 = vunpack.c.l.s4 1934713408
        %v1187 = vunpack.c.0.s8 %v1186
        %v1188 = vlaneseq
        %v1189 = vshrl.u32 %v1188, 7
        %v1190 = vsub.s32 %v1187, %v1189
        %v1191 = vrot.slane %v1184, %v1190
        %v1192 = vcombine.high %v1191, 0
        %v1195 = vpack.i.b16 %v1191, %v1166
        %v1196 = vshrl.u32 %v1166, 16
        %v1197 = vshrl.u32 %v1191, 16
        %v1198 = vpack.i.b16 %v1197, %v1196
        %v1201 = vpack.i.b16 %v1192, %v1167
        %v1202 = vshrl.u32 %v1167, 16
        %v1203 = vshrl.u32 %v1192, 16
        %v1204 = vpack.i.b16 %v1203, %v1202
        %1206 = vrot.lane.b32.xlu0 %v903, 120
        %v1207 = vpop.permute.xlu0 %1206
        %1209 = vrot.lane.b32.xlu0 %v903, 112
        %v1210 = vpop.permute.xlu0 %1209
        %1212 = vrot.lane.b32.xlu0 %v903, 104
        %v1213 = vpop.permute.xlu0 %1212
        %v1215 = vcombine.low %v903, %v1210
        %v1216 = vcombine.high %v903, %v1210
        %v1218 = vunpack.c.l.s4 1983009808
        %v1219 = vunpack.c.0.s8 %v1218
        %v1220 = vlaneseq
        %v1221 = vshrl.u32 %v1220, 7
        %v1222 = vsub.s32 %v1219, %v1221
        %v1223 = vrot.slane %v1215, %v1222
        %v1225 = vunpack.c.l.s4 1983009808
        %v1226 = vunpack.c.0.s8 %v1225
        %v1227 = vlaneseq
        %v1228 = vshrl.u32 %v1227, 7
        %v1229 = vsub.s32 %v1226, %v1228
        %v1230 = vrot.slane %v1216, %v1229
        %v1231 = vcombine.low %v1207, %v1213
        %v1232 = vcombine.high %v1207, %v1213
        %v1234 = vunpack.c.l.s4 1983009808
        %v1235 = vunpack.c.0.s8 %v1234
        %v1236 = vlaneseq
        %v1237 = vshrl.u32 %v1236, 7
        %v1238 = vsub.s32 %v1235, %v1237
        %v1239 = vrot.slane %v1231, %v1238
        %v1241 = vunpack.c.l.s4 1983009808
        %v1242 = vunpack.c.0.s8 %v1241
        %v1243 = vlaneseq
        %v1244 = vshrl.u32 %v1243, 7
        %v1245 = vsub.s32 %v1242, %v1244
        %v1246 = vrot.slane %v1232, %v1245
        %v1247 = vcombine.low %v1223, %v1239
        %v1248 = vcombine.high %v1223, %v1239
        %v1250 = vunpack.c.l.s4 1934713408
        %v1251 = vunpack.c.0.s8 %v1250
        %v1252 = vlaneseq
        %v1253 = vshrl.u32 %v1252, 7
        %v1254 = vsub.s32 %v1251, %v1253
        %v1255 = vrot.slane %v1247, %v1254
        %v1257 = vunpack.c.l.s4 1934713408
        %v1258 = vunpack.c.0.s8 %v1257
        %v1259 = vlaneseq
        %v1260 = vshrl.u32 %v1259, 7
        %v1261 = vsub.s32 %v1258, %v1260
        %v1262 = vrot.slane %v1248, %v1261
        %v1263 = vcombine.low %v1230, %v1246
        %v1264 = vcombine.high %v1230, %v1246
        %v1266 = vunpack.c.l.s4 1934713408
        %v1267 = vunpack.c.0.s8 %v1266
        %v1268 = vlaneseq
        %v1269 = vshrl.u32 %v1268, 7
        %v1270 = vsub.s32 %v1267, %v1269
        %v1271 = vrot.slane %v1263, %v1270
        %v1273 = vunpack.c.l.s4 1934713408
        %v1274 = vunpack.c.0.s8 %v1273
        %v1275 = vlaneseq
        %v1276 = vshrl.u32 %v1275, 7
        %v1277 = vsub.s32 %v1274, %v1276
        %v1278 = vrot.slane %v1264, %v1277
        %v1279 = vcombine.high %v1255, 0.0
        %v1280 = vcombine.high %v1262, 0.0
        %v1281 = vcombine.high %v1271, 0.0
        %v1282 = vcombine.high %v1278, 0.0
        %v1283 = vpack.c.bf16 %v1255, %v1255
        %v1284 = vpack.c.bf16 %v1279, %v1279
        %v1285 = vpack.c.bf16 %v1262, %v1262
        %v1286 = vpack.c.bf16 %v1280, %v1280
        %v1287 = vpack.c.bf16 %v1271, %v1271
        %v1288 = vpack.c.bf16 %v1281, %v1281
        %v1289 = vpack.c.bf16 %v1278, %v1278
        %v1290 = vpack.c.bf16 %v1282, %v1282
        %v1291 = vcombine.low %v1283, %v1287
        %v1293 = vunpack.c.l.s4 1983009808
        %v1294 = vunpack.c.0.s8 %v1293
        %v1295 = vlaneseq
        %v1296 = vshrl.u32 %v1295, 7
        %v1297 = vsub.s32 %v1294, %v1296
        %v1298 = vrot.slane %v1291, %v1297
        %v1299 = vcombine.low %v1285, %v1289
        %v1301 = vunpack.c.l.s4 1983009808
        %v1302 = vunpack.c.0.s8 %v1301
        %v1303 = vlaneseq
        %v1304 = vshrl.u32 %v1303, 7
        %v1305 = vsub.s32 %v1302, %v1304
        %v1306 = vrot.slane %v1299, %v1305
        %v1307 = vcombine.low %v1298, %v1306
        %v1309 = vunpack.c.l.s4 1934713408
        %v1310 = vunpack.c.0.s8 %v1309
        %v1311 = vlaneseq
        %v1312 = vshrl.u32 %v1311, 7
        %v1313 = vsub.s32 %v1310, %v1312
        %v1314 = vrot.slane %v1307, %v1313
        %v1315 = vcombine.high %v1314, 0
        %v1316 = vcombine.low %v1284, %v1288
        %v1318 = vunpack.c.l.s4 1983009808
        %v1319 = vunpack.c.0.s8 %v1318
        %v1320 = vlaneseq
        %v1321 = vshrl.u32 %v1320, 7
        %v1322 = vsub.s32 %v1319, %v1321
        %v1323 = vrot.slane %v1316, %v1322
        %v1324 = vcombine.low %v1286, %v1290
        %v1326 = vunpack.c.l.s4 1983009808
        %v1327 = vunpack.c.0.s8 %v1326
        %v1328 = vlaneseq
        %v1329 = vshrl.u32 %v1328, 7
        %v1330 = vsub.s32 %v1327, %v1329
        %v1331 = vrot.slane %v1324, %v1330
        %v1332 = vcombine.low %v1323, %v1331
        %v1334 = vunpack.c.l.s4 1934713408
        %v1335 = vunpack.c.0.s8 %v1334
        %v1336 = vlaneseq
        %v1337 = vshrl.u32 %v1336, 7
        %v1338 = vsub.s32 %v1335, %v1337
        %v1339 = vrot.slane %v1332, %v1338
        %v1340 = vcombine.high %v1339, 0
        %v1343 = vpack.i.b16 %v1339, %v1314
        %v1344 = vshrl.u32 %v1314, 16
        %v1345 = vshrl.u32 %v1339, 16
        %v1346 = vpack.i.b16 %v1345, %v1344
        %v1349 = vpack.i.b16 %v1340, %v1315
        %v1350 = vshrl.u32 %v1315, 16
        %v1351 = vshrl.u32 %v1340, 16
        %v1352 = vpack.i.b16 %v1351, %v1350
        %vm1353 = vcmask 64512
        %v1355 = vsel %vm1353, %v1047, 0
        %v1358 = vsel %vm1353, %v1195, 0
        %1360 = vmatprep.subr.bf16.mxu0 0
        %1361 = vmatpush1.bf16.xpose.msra.mxu0 0
        %1362 = vmatprep.subr.bf16.mxu0 0
        %1363 = vmatpush1.bf16.xpose.msra.mxu0 0
        %1364 = vmatprep.subr.bf16.mxu0 0
        %1365 = vmatpush1.bf16.xpose.msra.mxu0 0
        %1366 = vmatprep.subr.bf16.mxu0 0
        %1367 = vmatpush1.bf16.xpose.msra.mxu0 0
        %1368 = vmatprep.subr.bf16.mxu0 0
        %1369 = vmatpush1.bf16.xpose.msra.mxu0 0
        %1370 = vmatprep.subr.bf16.mxu0 0
        %1371 = vmatpush1.bf16.xpose.msra.mxu0 0
        %1372 = vmatprep.subr.bf16.mxu0 0
        %1373 = vmatpush1.bf16.xpose.msra.mxu0 0
        %1374 = vmatprep.subr.bf16.mxu0 0
        %1375 = vmatpush1.bf16.xpose.msra.mxu0 %v1358
        %1376 = vmatprep.subr.bf16.mxu0 0
        %1377 = vmatpush2.bf16.xpose.msra.mxu0 0
        %1378 = vmatprep.subr.bf16.mxu0 0
        %1379 = vmatpush2.bf16.xpose.msra.mxu0 0
        %1380 = vmatprep.subr.bf16.mxu0 0
        %1381 = vmatpush2.bf16.xpose.msra.mxu0 0
        %1382 = vmatprep.subr.bf16.mxu0 0
        %1383 = vmatpush2.bf16.xpose.msra.mxu0 0
        %1384 = vmatprep.subr.bf16.mxu0 0
        %1385 = vmatpush2.bf16.xpose.msra.mxu0 0
        %1386 = vmatprep.subr.bf16.mxu0 0
        %1387 = vmatpush2.bf16.xpose.msra.mxu0 0
        %1388 = vmatprep.subr.bf16.mxu0 0
        %1389 = vmatpush2.bf16.xpose.msra.mxu0 0
        %1390 = vmatprep.subr.bf16.mxu0 0
        %1391 = vmatpush2.bf16.xpose.msra.mxu0 0
        %1392 = vmatprep.mubr.bf16.mxu0 0
        %1393 = vmatmul.mubr.bf16.gmra.mxu0 %v1355
        %v1394 = vpop.f32.mrf.mxu0
        %v1395 = vadd.f32 0.0, %v1394
        %v1396 = vpop.f32.mrf.mxu0
        %v1397 = vpop.f32.mrf.mxu0
        %v1398 = vpop.f32.mrf.mxu0
        %1399 = vdwg.mxu0
        %v1401 = vsel %vm1353, %v1050, 0
        %v1404 = vsel %vm1353, %v1198, 0
        %1406 = vmatprep.subr.bf16.mxu0 0
        %1407 = vmatpush1.bf16.xpose.msra.mxu0 0
        %1408 = vmatprep.subr.bf16.mxu0 0
        %1409 = vmatpush1.bf16.xpose.msra.mxu0 0
        %1410 = vmatprep.subr.bf16.mxu0 0
        %1411 = vmatpush1.bf16.xpose.msra.mxu0 0
        %1412 = vmatprep.subr.bf16.mxu0 0
        %1413 = vmatpush1.bf16.xpose.msra.mxu0 0
        %1414 = vmatprep.subr.bf16.mxu0 0
        %1415 = vmatpush1.bf16.xpose.msra.mxu0 0
        %1416 = vmatprep.subr.bf16.mxu0 0
        %1417 = vmatpush1.bf16.xpose.msra.mxu0 0
        %1418 = vmatprep.subr.bf16.mxu0 0
        %1419 = vmatpush1.bf16.xpose.msra.mxu0 0
        %1420 = vmatprep.subr.bf16.mxu0 0
        %1421 = vmatpush1.bf16.xpose.msra.mxu0 %v1404
        %1422 = vmatprep.subr.bf16.mxu0 0
        %1423 = vmatpush2.bf16.xpose.msra.mxu0 0
        %1424 = vmatprep.subr.bf16.mxu0 0
        %1425 = vmatpush2.bf16.xpose.msra.mxu0 0
        %1426 = vmatprep.subr.bf16.mxu0 0
        %1427 = vmatpush2.bf16.xpose.msra.mxu0 0
        %1428 = vmatprep.subr.bf16.mxu0 0
        %1429 = vmatpush2.bf16.xpose.msra.mxu0 0
        %1430 = vmatprep.subr.bf16.mxu0 0
        %1431 = vmatpush2.bf16.xpose.msra.mxu0 0
        %1432 = vmatprep.subr.bf16.mxu0 0
        %1433 = vmatpush2.bf16.xpose.msra.mxu0 0
        %1434 = vmatprep.subr.bf16.mxu0 0
        %1435 = vmatpush2.bf16.xpose.msra.mxu0 0
        %1436 = vmatprep.subr.bf16.mxu0 0
        %1437 = vmatpush2.bf16.xpose.msra.mxu0 0
        %1438 = vmatprep.mubr.bf16.mxu0 0
        %1439 = vmatmul.mubr.bf16.gmra.mxu0 %v1401
        %v1440 = vpop.f32.mrf.mxu0
        %v1441 = vadd.f32 0.0, %v1440
        %v1442 = vpop.f32.mrf.mxu0
        %v1443 = vpop.f32.mrf.mxu0
        %v1444 = vpop.f32.mrf.mxu0
        %1445 = vdwg.mxu0
        %v1447 = vsel %vm1353, %v1053, 0
        %v1450 = vsel %vm1353, %v1201, 0
        %1452 = vmatprep.subr.bf16.mxu0 0
        %1453 = vmatpush1.bf16.xpose.msra.mxu0 0
        %1454 = vmatprep.subr.bf16.mxu0 0
        %1455 = vmatpush1.bf16.xpose.msra.mxu0 0
        %1456 = vmatprep.subr.bf16.mxu0 0
        %1457 = vmatpush1.bf16.xpose.msra.mxu0 0
        %1458 = vmatprep.subr.bf16.mxu0 0
        %1459 = vmatpush1.bf16.xpose.msra.mxu0 0
        %1460 = vmatprep.subr.bf16.mxu0 0
        %1461 = vmatpush1.bf16.xpose.msra.mxu0 0
        %1462 = vmatprep.subr.bf16.mxu0 0
        %1463 = vmatpush1.bf16.xpose.msra.mxu0 0
        %1464 = vmatprep.subr.bf16.mxu0 0
        %1465 = vmatpush1.bf16.xpose.msra.mxu0 0
        %1466 = vmatprep.subr.bf16.mxu0 0
        %1467 = vmatpush1.bf16.xpose.msra.mxu0 %v1450
        %1468 = vmatprep.subr.bf16.mxu0 0
        %1469 = vmatpush2.bf16.xpose.msra.mxu0 0
        %1470 = vmatprep.subr.bf16.mxu0 0
        %1471 = vmatpush2.bf16.xpose.msra.mxu0 0
        %1472 = vmatprep.subr.bf16.mxu0 0
        %1473 = vmatpush2.bf16.xpose.msra.mxu0 0
        %1474 = vmatprep.subr.bf16.mxu0 0
        %1475 = vmatpush2.bf16.xpose.msra.mxu0 0
        %1476 = vmatprep.subr.bf16.mxu0 0
        %1477 = vmatpush2.bf16.xpose.msra.mxu0 0
        %1478 = vmatprep.subr.bf16.mxu0 0
        %1479 = vmatpush2.bf16.xpose.msra.mxu0 0
        %1480 = vmatprep.subr.bf16.mxu0 0
        %1481 = vmatpush2.bf16.xpose.msra.mxu0 0
        %1482 = vmatprep.subr.bf16.mxu0 0
        %1483 = vmatpush2.bf16.xpose.msra.mxu0 0
        %1484 = vmatprep.mubr.bf16.mxu0 0
        %1485 = vmatmul.mubr.bf16.gmra.mxu0 %v1447
        %v1486 = vpop.f32.mrf.mxu0
        %v1487 = vadd.f32 0.0, %v1486
        %v1488 = vpop.f32.mrf.mxu0
        %v1489 = vpop.f32.mrf.mxu0
        %v1490 = vpop.f32.mrf.mxu0
        %1491 = vdwg.mxu0
        %v1493 = vsel %vm1353, %v1056, 0
        %v1496 = vsel %vm1353, %v1204, 0
        %1498 = vmatprep.subr.bf16.mxu0 0
        %1499 = vmatpush1.bf16.xpose.msra.mxu0 0
        %1500 = vmatprep.subr.bf16.mxu0 0
        %1501 = vmatpush1.bf16.xpose.msra.mxu0 0
        %1502 = vmatprep.subr.bf16.mxu0 0
        %1503 = vmatpush1.bf16.xpose.msra.mxu0 0
        %1504 = vmatprep.subr.bf16.mxu0 0
        %1505 = vmatpush1.bf16.xpose.msra.mxu0 0
        %1506 = vmatprep.subr.bf16.mxu0 0
        %1507 = vmatpush1.bf16.xpose.msra.mxu0 0
        %1508 = vmatprep.subr.bf16.mxu0 0
        %1509 = vmatpush1.bf16.xpose.msra.mxu0 0
        %1510 = vmatprep.subr.bf16.mxu0 0
        %1511 = vmatpush1.bf16.xpose.msra.mxu0 0
        %1512 = vmatprep.subr.bf16.mxu0 0
        %1513 = vmatpush1.bf16.xpose.msra.mxu0 %v1496
        %1514 = vmatprep.subr.bf16.mxu0 0
        %1515 = vmatpush2.bf16.xpose.msra.mxu0 0
        %1516 = vmatprep.subr.bf16.mxu0 0
        %1517 = vmatpush2.bf16.xpose.msra.mxu0 0
        %1518 = vmatprep.subr.bf16.mxu0 0
        %1519 = vmatpush2.bf16.xpose.msra.mxu0 0
        %1520 = vmatprep.subr.bf16.mxu0 0
        %1521 = vmatpush2.bf16.xpose.msra.mxu0 0
        %1522 = vmatprep.subr.bf16.mxu0 0
        %1523 = vmatpush2.bf16.xpose.msra.mxu0 0
        %1524 = vmatprep.subr.bf16.mxu0 0
        %1525 = vmatpush2.bf16.xpose.msra.mxu0 0
        %1526 = vmatprep.subr.bf16.mxu0 0
        %1527 = vmatpush2.bf16.xpose.msra.mxu0 0
        %1528 = vmatprep.subr.bf16.mxu0 0
        %1529 = vmatpush2.bf16.xpose.msra.mxu0 0
        %1530 = vmatprep.mubr.bf16.mxu0 0
        %1531 = vmatmul.mubr.bf16.gmra.mxu0 %v1493
        %v1532 = vpop.f32.mrf.mxu0
        %v1533 = vadd.f32 0.0, %v1532
        %v1534 = vpop.f32.mrf.mxu0
        %v1535 = vpop.f32.mrf.mxu0
        %v1536 = vpop.f32.mrf.mxu0
        %1537 = vdwg.mxu0
        %v1538 = vsel %vm1353, %v1395, -inf
        %1539 = vmax.xlane.f32.xlu0 %v1538
        %v1540 = vpop.xlane.xlu0 %1539
        %v1541 = vsel %vm1353, %v1441, -inf
        %1542 = vmax.xlane.f32.xlu0 %v1541
        %v1543 = vpop.xlane.xlu0 %1542
        %v1544 = vsel %vm1353, %v1487, -inf
        %1545 = vmax.xlane.f32.xlu0 %v1544
        %v1546 = vpop.xlane.xlu0 %1545
        %v1547 = vsel %vm1353, %v1533, -inf
        %1548 = vmax.xlane.f32.xlu0 %v1547
        %v1549 = vpop.xlane.xlu0 %1548
        %v1550 = vsub.f32 %v1395, %v1540
        %v1551 = vsub.f32 %v1441, %v1543
        %v1552 = vsub.f32 %v1487, %v1546
        %v1553 = vsub.f32 %v1533, %v1549
        %v1554 = vmul.f32 %v1550, 1.442695
        %v1555 = vpow.pop %v1554
        %v1556 = vmul.f32 %v1551, 1.442695
        %v1557 = vpow.pop %v1556
        %v1558 = vmul.f32 %v1552, 1.442695
        %v1559 = vpow.pop %v1558
        %v1560 = vmul.f32 %v1553, 1.442695
        %v1561 = vpow.pop %v1560
        %v1562 = vsel %vm1353, %v1555, 0.0
        %1563 = vadd.xlane.f32.xlu0 %v1562
        %v1564 = vpop.xlane.xlu0 %1563
        %v1565 = vsel %vm1353, %v1557, 0.0
        %1566 = vadd.xlane.f32.xlu0 %v1565
        %v1567 = vpop.xlane.xlu0 %1566
        %v1568 = vsel %vm1353, %v1559, 0.0
        %1569 = vadd.xlane.f32.xlu0 %v1568
        %v1570 = vpop.xlane.xlu0 %1569
        %v1571 = vsel %vm1353, %v1561, 0.0
        %1572 = vadd.xlane.f32.xlu0 %v1571
        %v1573 = vpop.xlane.xlu0 %1572
        %v1574 = vrcp.pop %v1564
        %v1575 = vrcp.pop %v1567
        %v1576 = vrcp.pop %v1570
        %v1577 = vrcp.pop %v1573
        %v1578 = vmul.f32 %v1555, %v1574
        %v1579 = vmul.f32 %v1557, %v1575
        %v1580 = vmul.f32 %v1559, %v1576
        %v1581 = vmul.f32 %v1561, %v1577
        %v1582 = vpack.c.bf16 %v1578, %v1578
        %v1583 = vpack.c.bf16 %v1579, %v1579
        %v1584 = vpack.c.bf16 %v1580, %v1580
        %v1585 = vpack.c.bf16 %v1581, %v1581
        %v1587 = vsel %vm1353, %v1582, 0
        %vm1589 = vcmask 1043456
        %v1591 = vsel %vm1589, %v1343, 0
        %1593 = vmatprep.subr.bf16.mxu0 0
        %1594 = vmatpush1.bf16.msra.mxu0 0
        %1595 = vmatprep.subr.bf16.mxu0 0
        %1596 = vmatpush1.bf16.msra.mxu0 0
        %1597 = vmatprep.subr.bf16.mxu0 0
        %1598 = vmatpush1.bf16.msra.mxu0 0
        %1599 = vmatprep.subr.bf16.mxu0 0
        %1600 = vmatpush1.bf16.msra.mxu0 0
        %1601 = vmatprep.subr.bf16.mxu0 0
        %1602 = vmatpush1.bf16.msra.mxu0 0
        %1603 = vmatprep.subr.bf16.mxu0 0
        %1604 = vmatpush1.bf16.msra.mxu0 0
        %1605 = vmatprep.subr.bf16.mxu0 0
        %1606 = vmatpush1.bf16.msra.mxu0 0
        %1607 = vmatprep.subr.bf16.mxu0 0
        %1608 = vmatpush1.bf16.msra.mxu0 %v1591
        %1609 = vmatprep.subr.bf16.mxu0 0
        %1610 = vmatpush2.bf16.msra.mxu0 0
        %1611 = vmatprep.subr.bf16.mxu0 0
        %1612 = vmatpush2.bf16.msra.mxu0 0
        %1613 = vmatprep.subr.bf16.mxu0 0
        %1614 = vmatpush2.bf16.msra.mxu0 0
        %1615 = vmatprep.subr.bf16.mxu0 0
        %1616 = vmatpush2.bf16.msra.mxu0 0
        %1617 = vmatprep.subr.bf16.mxu0 0
        %1618 = vmatpush2.bf16.msra.mxu0 0
        %1619 = vmatprep.subr.bf16.mxu0 0
        %1620 = vmatpush2.bf16.msra.mxu0 0
        %1621 = vmatprep.subr.bf16.mxu0 0
        %1622 = vmatpush2.bf16.msra.mxu0 0
        %1623 = vmatprep.subr.bf16.mxu0 0
        %1624 = vmatpush2.bf16.msra.mxu0 0
        %1625 = vmatprep.mubr.bf16.mxu0 0
        %1626 = vmatmul.mubr.bf16.gmra.mxu0 %v1587
        %v1627 = vpop.f32.mrf.mxu0
        %v1628 = vadd.f32 0.0, %v1627
        %v1629 = vpop.f32.mrf.mxu0
        %v1630 = vpop.f32.mrf.mxu0
        %v1631 = vpop.f32.mrf.mxu0
        %1632 = vdwg.mxu0
        %v1634 = vsel %vm1353, %v1583, 0
        %v1637 = vsel %vm1589, %v1346, 0
        %1639 = vmatprep.subr.bf16.mxu0 0
        %1640 = vmatpush1.bf16.msra.mxu0 0
        %1641 = vmatprep.subr.bf16.mxu0 0
        %1642 = vmatpush1.bf16.msra.mxu0 0
        %1643 = vmatprep.subr.bf16.mxu0 0
        %1644 = vmatpush1.bf16.msra.mxu0 0
        %1645 = vmatprep.subr.bf16.mxu0 0
        %1646 = vmatpush1.bf16.msra.mxu0 0
        %1647 = vmatprep.subr.bf16.mxu0 0
        %1648 = vmatpush1.bf16.msra.mxu0 0
        %1649 = vmatprep.subr.bf16.mxu0 0
        %1650 = vmatpush1.bf16.msra.mxu0 0
        %1651 = vmatprep.subr.bf16.mxu0 0
        %1652 = vmatpush1.bf16.msra.mxu0 0
        %1653 = vmatprep.subr.bf16.mxu0 0
        %1654 = vmatpush1.bf16.msra.mxu0 %v1637
        %1655 = vmatprep.subr.bf16.mxu0 0
        %1656 = vmatpush2.bf16.msra.mxu0 0
        %1657 = vmatprep.subr.bf16.mxu0 0
        %1658 = vmatpush2.bf16.msra.mxu0 0
        %1659 = vmatprep.subr.bf16.mxu0 0
        %1660 = vmatpush2.bf16.msra.mxu0 0
        %1661 = vmatprep.subr.bf16.mxu0 0
        %1662 = vmatpush2.bf16.msra.mxu0 0
        %1663 = vmatprep.subr.bf16.mxu0 0
        %1664 = vmatpush2.bf16.msra.mxu0 0
        %1665 = vmatprep.subr.bf16.mxu0 0
        %1666 = vmatpush2.bf16.msra.mxu0 0
        %1667 = vmatprep.subr.bf16.mxu0 0
        %1668 = vmatpush2.bf16.msra.mxu0 0
        %1669 = vmatprep.subr.bf16.mxu0 0
        %1670 = vmatpush2.bf16.msra.mxu0 0
        %1671 = vmatprep.mubr.bf16.mxu0 0
        %1672 = vmatmul.mubr.bf16.gmra.mxu0 %v1634
        %v1673 = vpop.f32.mrf.mxu0
        %v1674 = vadd.f32 0.0, %v1673
        %v1675 = vpop.f32.mrf.mxu0
        %v1676 = vpop.f32.mrf.mxu0
        %v1677 = vpop.f32.mrf.mxu0
        %1678 = vdwg.mxu0
        %v1680 = vsel %vm1353, %v1584, 0
        %v1683 = vsel %vm1589, %v1349, 0
        %1685 = vmatprep.subr.bf16.mxu0 0
        %1686 = vmatpush1.bf16.msra.mxu0 0
        %1687 = vmatprep.subr.bf16.mxu0 0
        %1688 = vmatpush1.bf16.msra.mxu0 0
        %1689 = vmatprep.subr.bf16.mxu0 0
        %1690 = vmatpush1.bf16.msra.mxu0 0
        %1691 = vmatprep.subr.bf16.mxu0 0
        %1692 = vmatpush1.bf16.msra.mxu0 0
        %1693 = vmatprep.subr.bf16.mxu0 0
        %1694 = vmatpush1.bf16.msra.mxu0 0
        %1695 = vmatprep.subr.bf16.mxu0 0
        %1696 = vmatpush1.bf16.msra.mxu0 0
        %1697 = vmatprep.subr.bf16.mxu0 0
        %1698 = vmatpush1.bf16.msra.mxu0 0
        %1699 = vmatprep.subr.bf16.mxu0 0
        %1700 = vmatpush1.bf16.msra.mxu0 %v1683
        %1701 = vmatprep.subr.bf16.mxu0 0
        %1702 = vmatpush2.bf16.msra.mxu0 0
        %1703 = vmatprep.subr.bf16.mxu0 0
        %1704 = vmatpush2.bf16.msra.mxu0 0
        %1705 = vmatprep.subr.bf16.mxu0 0
        %1706 = vmatpush2.bf16.msra.mxu0 0
        %1707 = vmatprep.subr.bf16.mxu0 0
        %1708 = vmatpush2.bf16.msra.mxu0 0
        %1709 = vmatprep.subr.bf16.mxu0 0
        %1710 = vmatpush2.bf16.msra.mxu0 0
        %1711 = vmatprep.subr.bf16.mxu0 0
        %1712 = vmatpush2.bf16.msra.mxu0 0
        %1713 = vmatprep.subr.bf16.mxu0 0
        %1714 = vmatpush2.bf16.msra.mxu0 0
        %1715 = vmatprep.subr.bf16.mxu0 0
        %1716 = vmatpush2.bf16.msra.mxu0 0
        %1717 = vmatprep.mubr.bf16.mxu0 0
        %1718 = vmatmul.mubr.bf16.gmra.mxu0 %v1680
        %v1719 = vpop.f32.mrf.mxu0
        %v1720 = vadd.f32 0.0, %v1719
        %v1721 = vpop.f32.mrf.mxu0
        %v1722 = vpop.f32.mrf.mxu0
        %v1723 = vpop.f32.mrf.mxu0
        %1724 = vdwg.mxu0
        %v1726 = vsel %vm1353, %v1585, 0
        %v1729 = vsel %vm1589, %v1352, 0
        %1731 = vmatprep.subr.bf16.mxu0 0
        %1732 = vmatpush1.bf16.msra.mxu0 0
        %1733 = vmatprep.subr.bf16.mxu0 0
        %1734 = vmatpush1.bf16.msra.mxu0 0
        %1735 = vmatprep.subr.bf16.mxu0 0
        %1736 = vmatpush1.bf16.msra.mxu0 0
        %1737 = vmatprep.subr.bf16.mxu0 0
        %1738 = vmatpush1.bf16.msra.mxu0 0
        %1739 = vmatprep.subr.bf16.mxu0 0
        %1740 = vmatpush1.bf16.msra.mxu0 0
        %1741 = vmatprep.subr.bf16.mxu0 0
        %1742 = vmatpush1.bf16.msra.mxu0 0
        %1743 = vmatprep.subr.bf16.mxu0 0
        %1744 = vmatpush1.bf16.msra.mxu0 0
        %1745 = vmatprep.subr.bf16.mxu0 0
        %1746 = vmatpush1.bf16.msra.mxu0 %v1729
        %1747 = vmatprep.subr.bf16.mxu0 0
        %1748 = vmatpush2.bf16.msra.mxu0 0
        %1749 = vmatprep.subr.bf16.mxu0 0
        %1750 = vmatpush2.bf16.msra.mxu0 0
        %1751 = vmatprep.subr.bf16.mxu0 0
        %1752 = vmatpush2.bf16.msra.mxu0 0
        %1753 = vmatprep.subr.bf16.mxu0 0
        %1754 = vmatpush2.bf16.msra.mxu0 0
        %1755 = vmatprep.subr.bf16.mxu0 0
        %1756 = vmatpush2.bf16.msra.mxu0 0
        %1757 = vmatprep.subr.bf16.mxu0 0
        %1758 = vmatpush2.bf16.msra.mxu0 0
        %1759 = vmatprep.subr.bf16.mxu0 0
        %1760 = vmatpush2.bf16.msra.mxu0 0
        %1761 = vmatprep.subr.bf16.mxu0 0
        %1762 = vmatpush2.bf16.msra.mxu0 0
        %1763 = vmatprep.mubr.bf16.mxu0 0
        %1764 = vmatmul.mubr.bf16.gmra.mxu0 %v1726
        %v1765 = vpop.f32.mrf.mxu0
        %v1766 = vadd.f32 0.0, %v1765
        %v1767 = vpop.f32.mrf.mxu0
        %v1768 = vpop.f32.mrf.mxu0
        %v1769 = vpop.f32.mrf.mxu0
        %1770 = vdwg.mxu0
        %v1771 = vcombine.low %v1628, %v1720
        %v1772 = vcombine.high %v1628, %v1720
        %v1774 = vunpack.c.l.s4 1983009808
        %v1775 = vunpack.c.0.s8 %v1774
        %v1776 = vlaneseq
        %v1777 = vshrl.u32 %v1776, 7
        %v1778 = vsub.s32 %v1775, %v1777
        %v1779 = vrot.slane %v1771, %v1778
        %v1781 = vunpack.c.l.s4 1983009808
        %v1782 = vunpack.c.0.s8 %v1781
        %v1783 = vlaneseq
        %v1784 = vshrl.u32 %v1783, 7
        %v1785 = vsub.s32 %v1782, %v1784
        %v1786 = vrot.slane %v1772, %v1785
        %v1787 = vcombine.low %v1674, %v1766
        %v1788 = vcombine.high %v1674, %v1766
        %v1790 = vunpack.c.l.s4 1983009808
        %v1791 = vunpack.c.0.s8 %v1790
        %v1792 = vlaneseq
        %v1793 = vshrl.u32 %v1792, 7
        %v1794 = vsub.s32 %v1791, %v1793
        %v1795 = vrot.slane %v1787, %v1794
        %v1797 = vunpack.c.l.s4 1983009808
        %v1798 = vunpack.c.0.s8 %v1797
        %v1799 = vlaneseq
        %v1800 = vshrl.u32 %v1799, 7
        %v1801 = vsub.s32 %v1798, %v1800
        %v1802 = vrot.slane %v1788, %v1801
        %v1803 = vcombine.low %v1779, %v1795
        %v1804 = vcombine.high %v1779, %v1795
        %v1806 = vunpack.c.l.s4 1934713408
        %v1807 = vunpack.c.0.s8 %v1806
        %v1808 = vlaneseq
        %v1809 = vshrl.u32 %v1808, 7
        %v1810 = vsub.s32 %v1807, %v1809
        %v1811 = vrot.slane %v1803, %v1810
        %v1813 = vunpack.c.l.s4 1934713408
        %v1814 = vunpack.c.0.s8 %v1813
        %v1815 = vlaneseq
        %v1816 = vshrl.u32 %v1815, 7
        %v1817 = vsub.s32 %v1814, %v1816
        %v1818 = vrot.slane %v1804, %v1817
        %v1819 = vcombine.low %v1786, %v1802
        %v1820 = vcombine.high %v1786, %v1802
        %v1822 = vunpack.c.l.s4 1934713408
        %v1823 = vunpack.c.0.s8 %v1822
        %v1824 = vlaneseq
        %v1825 = vshrl.u32 %v1824, 7
        %v1826 = vsub.s32 %v1823, %v1825
        %v1827 = vrot.slane %v1819, %v1826
        %v1829 = vunpack.c.l.s4 1934713408
        %v1830 = vunpack.c.0.s8 %v1829
        %v1831 = vlaneseq
        %v1832 = vshrl.u32 %v1831, 7
        %v1833 = vsub.s32 %v1830, %v1832
        %v1834 = vrot.slane %v1820, %v1833
        %v1835 = vcombine.high %v1811, 0.0
        %v1836 = vcombine.high %v1818, 0.0
        %v1837 = vcombine.high %v1827, 0.0
        %v1838 = vcombine.high %v1834, 0.0
        %v1839 = vcombine.low %v1811, %v1818
        %v1841 = vunpack.c.l.s4 1983009808
        %v1842 = vunpack.c.0.s8 %v1841
        %v1843 = vlaneseq
        %v1844 = vshrl.u32 %v1843, 7
        %v1845 = vsub.s32 %v1842, %v1844
        %v1846 = vrot.slane %v1839, %v1845
        %v1847 = vcombine.low %v1835, %v1836
        %v1849 = vunpack.c.l.s4 1983009808
        %v1850 = vunpack.c.0.s8 %v1849
        %v1851 = vlaneseq
        %v1852 = vshrl.u32 %v1851, 7
        %v1853 = vsub.s32 %v1850, %v1852
        %v1854 = vrot.slane %v1847, %v1853
        %v1855 = vcombine.low %v1827, %v1834
        %v1857 = vunpack.c.l.s4 1983009808
        %v1858 = vunpack.c.0.s8 %v1857
        %v1859 = vlaneseq
        %v1860 = vshrl.u32 %v1859, 7
        %v1861 = vsub.s32 %v1858, %v1860
        %v1862 = vrot.slane %v1855, %v1861
        %v1863 = vcombine.low %v1837, %v1838
        %v1865 = vunpack.c.l.s4 1983009808
        %v1866 = vunpack.c.0.s8 %v1865
        %v1867 = vlaneseq
        %v1868 = vshrl.u32 %v1867, 7
        %v1869 = vsub.s32 %v1866, %v1868
        %v1870 = vrot.slane %v1863, %v1869
        %v1871 = vcombine.low %v1846, %v1854
        %v1872 = vcombine.high %v1846, %v1854
        %v1874 = vunpack.c.l.s4 1934713408
        %v1875 = vunpack.c.0.s8 %v1874
        %v1876 = vlaneseq
        %v1877 = vshrl.u32 %v1876, 7
        %v1878 = vsub.s32 %v1875, %v1877
        %v1879 = vrot.slane %v1871, %v1878
        %v1881 = vunpack.c.l.s4 1934713408
        %v1882 = vunpack.c.0.s8 %v1881
        %v1883 = vlaneseq
        %v1884 = vshrl.u32 %v1883, 7
        %v1885 = vsub.s32 %v1882, %v1884
        %v1886 = vrot.slane %v1872, %v1885
        %v1887 = vcombine.low %v1862, %v1870
        %v1888 = vcombine.high %v1862, %v1870
        %v1890 = vunpack.c.l.s4 1934713408
        %v1891 = vunpack.c.0.s8 %v1890
        %v1892 = vlaneseq
        %v1893 = vshrl.u32 %v1892, 7
        %v1894 = vsub.s32 %v1891, %v1893
        %v1895 = vrot.slane %v1887, %v1894
        %v1897 = vunpack.c.l.s4 1934713408
        %v1898 = vunpack.c.0.s8 %v1897
        %v1899 = vlaneseq
        %v1900 = vshrl.u32 %v1899, 7
        %v1901 = vsub.s32 %v1898, %v1900
        %v1902 = vrot.slane %v1888, %v1901
        %v1903 = vcombine.low %v1879, %v1895
        %v1904 = vcombine.high %v1879, %v1895
        %v1905 = vcombine.low %v1886, %v1902
        %v1906 = vcombine.high %v1886, %v1902
        %1908 = vrot.lane.b32.xlu0 %v1904, 8
        %v1909 = vpop.permute.xlu0 %1908
        %1912 = vrot.lane.b32.xlu0 %v1905, 16
        %v1913 = vpop.permute.xlu0 %1912
        %1916 = vrot.lane.b32.xlu0 %v1906, 24
        %v1917 = vpop.permute.xlu0 %1916
        %v1919 = vsel %vm1353, %v1903, %v1909
        %vm1920 = vcmask 130048
        %v1921 = vsel %vm1920, %v1919, %v1913
        %vm1922 = vcmask 195584
        %v1923 = vsel %vm1922, %v1921, %v1917
        %v1924 = vpack.c.bf16 %v1923, %v1923
        %v1925 = vld [vmem:[#allocation11] sm:$0xf]
        %v1926 = vld [vmem:[#allocation11 + $0x4] sm:$0xf]
        %v1927 = vld [vmem:[#allocation11 + $0x8] sm:$0xf]
        %v1928 = vld [vmem:[#allocation11 + $0xc] sm:$0xf]
        %v1929 = vld [vmem:[#allocation13] sm:$0x1]
        %v1931 = vlaneseq
        %v1932 = vshrl.u32 %v1931, 7
        %v1933 = vsub.s32 0, %v1932
        %v1934 = vrot.slane %v1929, %v1933
        %v1940 = vunpack.c.l.b16 %v1925
        %v1941 = vunpack.c.l.b16 %v1926
        %v1942 = vunpack.c.l.b16 %v1927
        %v1943 = vunpack.c.l.b16 %v1928
        %v1944 = vpack.c.b16 %v1941, %v1940
        %v1945 = vpack.c.b16 %v1943, %v1942
        %v1949 = vsel %vm735, %v1924, 0
        %1951 = vmatprep.subr.bf16.mxu0 0
        %1952 = vmatpush1.bf16.msra.mxu0 0
        %1953 = vmatprep.subr.bf16.mxu0 0
        %1954 = vmatpush1.bf16.msra.mxu0 0
        %1955 = vmatprep.subr.bf16.mxu0 0
        %1956 = vmatpush1.bf16.msra.mxu0 0
        %1957 = vmatprep.subr.bf16.mxu0 0
        %1958 = vmatpush1.bf16.msra.mxu0 0
        %1959 = vmatprep.subr.bf16.mxu0 0
        %1960 = vmatpush1.bf16.msra.mxu0 0
        %1961 = vmatprep.subr.bf16.mxu0 0
        %1962 = vmatpush1.bf16.msra.mxu0 0
        %1963 = vmatprep.subr.bf16.mxu0 0
        %1964 = vmatpush1.bf16.msra.mxu0 %v1945
        %1965 = vmatprep.subr.bf16.mxu0 0
        %1966 = vmatpush1.bf16.msra.mxu0 %v1944
        %1967 = vmatprep.subr.bf16.mxu0 0
        %1968 = vmatpush2.bf16.msra.mxu0 0
        %1969 = vmatprep.subr.bf16.mxu0 0
        %1970 = vmatpush2.bf16.msra.mxu0 0
        %1971 = vmatprep.subr.bf16.mxu0 0
        %1972 = vmatpush2.bf16.msra.mxu0 0
        %1973 = vmatprep.subr.bf16.mxu0 0
        %1974 = vmatpush2.bf16.msra.mxu0 0
        %1975 = vmatprep.subr.bf16.mxu0 0
        %1976 = vmatpush2.bf16.msra.mxu0 0
        %1977 = vmatprep.subr.bf16.mxu0 0
        %1978 = vmatpush2.bf16.msra.mxu0 0
        %1979 = vmatprep.subr.bf16.mxu0 0
        %1980 = vmatpush2.bf16.msra.mxu0 0
        %1981 = vmatprep.subr.bf16.mxu0 0
        %1982 = vmatpush2.bf16.msra.mxu0 0
        %1983 = vmatprep.mubr.bf16.mxu0 0
        %1984 = vmatmul.mubr.bf16.gmra.mxu0 %v1949
        %v1985 = vpop.f32.mrf.mxu0
        %v1986 = vadd.f32 %v1934, %v1985
        %v1987 = vpop.f32.mrf.mxu0
        %v1988 = vpop.f32.mrf.mxu0
        %v1989 = vpop.f32.mrf.mxu0
        %1990 = vdwg.mxu0
        %v1991 = vadd.f32 %v708, %v1986
        %v1992 = vld [vmem:[%s10] sm:$0x1]
        %v1993 = vld [vmem:[%s11] sm:$0x1]
        %v1994 = vsel %vm735, %v1991, 0.0
        %1995 = vadd.xlane.f32.xlu0 %v1994
        %v1996 = vpop.xlane.xlu0 %1995
        %v1997 = vrcp.pop 32.0
        %v1998 = vmul.f32 %v1996, %v1997
        %v1999 = vmul.f32 %v1991, %v1991
        %v2000 = vsel %vm735, %v1999, 0.0
        %2001 = vadd.xlane.f32.xlu0 %v2000
        %v2002 = vpop.xlane.xlu0 %2001
        %v2003 = vmul.f32 %v2002, %v1997
        %v2004 = vmul.f32 %v1998, %v1998
        %v2005 = vsub.f32 %v2003, %v2004
        %v2006 = vsub.f32 %v1991, %v1998
        %v2007 = vadd.f32 %v2005, 1e-05
        %v2008 = vrsqrt.pop %v2007
        %v2009 = vmul.f32 %v2006, %v2008
        %v2011 = vlaneseq
        %v2012 = vshrl.u32 %v2011, 7
        %v2013 = vsub.s32 0, %v2012
        %v2014 = vrot.slane %v1992, %v2013
        %v2016 = vmul.f32 %v2009, %v2014
        %v2018 = vlaneseq
        %v2019 = vshrl.u32 %v2018, 7
        %v2020 = vsub.s32 0, %v2019
        %v2021 = vrot.slane %v1993, %v2020
        %v2023 = vadd.f32 %v2016, %v2021
        %v2024 = vpack.c.bf16 %v2023, %v2023
        %v2025 = vld [vmem:[%s12] sm:$0xf]
        %v2026 = vld [vmem:[%s12 + $0x4] sm:$0xf]
        %v2027 = vld [vmem:[%s12 + $0x8] sm:$0xf]
        %v2028 = vld [vmem:[%s12 + $0xc] sm:$0xf]
        %v2029 = vld [vmem:[%s13] sm:$0x1]
        %v2031 = vlaneseq
        %v2032 = vshrl.u32 %v2031, 7
        %v2033 = vsub.s32 0, %v2032
        %v2034 = vrot.slane %v2029, %v2033
        %v2040 = vunpack.c.l.b16 %v2025
        %v2041 = vunpack.c.l.b16 %v2026
        %v2042 = vunpack.c.l.b16 %v2027
        %v2043 = vunpack.c.l.b16 %v2028
        %v2044 = vpack.c.b16 %v2041, %v2040
        %v2045 = vpack.c.b16 %v2043, %v2042
        %v2049 = vsel %vm735, %v2024, 0
        %2051 = vmatprep.subr.bf16.mxu0 0
        %2052 = vmatpush1.bf16.msra.mxu0 0
        %2053 = vmatprep.subr.bf16.mxu0 0
        %2054 = vmatpush1.bf16.msra.mxu0 0
        %2055 = vmatprep.subr.bf16.mxu0 0
        %2056 = vmatpush1.bf16.msra.mxu0 0
        %2057 = vmatprep.subr.bf16.mxu0 0
        %2058 = vmatpush1.bf16.msra.mxu0 0
        %2059 = vmatprep.subr.bf16.mxu0 0
        %2060 = vmatpush1.bf16.msra.mxu0 0
        %2061 = vmatprep.subr.bf16.mxu0 0
        %2062 = vmatpush1.bf16.msra.mxu0 0
        %2063 = vmatprep.subr.bf16.mxu0 0
        %2064 = vmatpush1.bf16.msra.mxu0 %v2045
        %2065 = vmatprep.subr.bf16.mxu0 0
        %2066 = vmatpush1.bf16.msra.mxu0 %v2044
        %2067 = vmatprep.subr.bf16.mxu0 0
        %2068 = vmatpush2.bf16.msra.mxu0 0
        %2069 = vmatprep.subr.bf16.mxu0 0
        %2070 = vmatpush2.bf16.msra.mxu0 0
        %2071 = vmatprep.subr.bf16.mxu0 0
        %2072 = vmatpush2.bf16.msra.mxu0 0
        %2073 = vmatprep.subr.bf16.mxu0 0
        %2074 = vmatpush2.bf16.msra.mxu0 0
        %2075 = vmatprep.subr.bf16.mxu0 0
        %2076 = vmatpush2.bf16.msra.mxu0 0
        %2077 = vmatprep.subr.bf16.mxu0 0
        %2078 = vmatpush2.bf16.msra.mxu0 0
        %2079 = vmatprep.subr.bf16.mxu0 0
        %2080 = vmatpush2.bf16.msra.mxu0 0
        %2081 = vmatprep.subr.bf16.mxu0 0
        %2082 = vmatpush2.bf16.msra.mxu0 0
        %2083 = vmatprep.mubr.bf16.mxu0 0
        %2084 = vmatmul.mubr.bf16.gmra.mxu0 %v2049
        %v2085 = vpop.f32.mrf.mxu0
        %v2086 = vadd.f32 %v2034, %v2085
        %v2087 = vpop.f32.mrf.mxu0
        %v2088 = vpop.f32.mrf.mxu0
        %v2089 = vpop.f32.mrf.mxu0
        %2090 = vdwg.mxu0
        %v2091 = vmax.f32 %v2086, 0.0
        %v2092 = vpack.c.bf16 %v2091, %v2091
        %v2093 = vld [vmem:[%s14] sm:$0xf]
        %v2094 = vld [vmem:[%s14 + $0x4] sm:$0xf]
        %v2095 = vld [vmem:[%s14 + $0x8] sm:$0xf]
        %v2096 = vld [vmem:[%s14 + $0xc] sm:$0xf]
        %v2097 = vld [vmem:[%s14 + $0x10] sm:$0xf]
        %v2098 = vld [vmem:[%s14 + $0x14] sm:$0xf]
        %v2099 = vld [vmem:[%s14 + $0x18] sm:$0xf]
        %v2100 = vld [vmem:[%s14 + $0x1c] sm:$0xf]
        %v2101 = vld [vmem:[%s15] sm:$0x1]
        %v2103 = vlaneseq
        %v2104 = vshrl.u32 %v2103, 7
        %v2105 = vsub.s32 0, %v2104
        %v2106 = vrot.slane %v2101, %v2105
        %v2116 = vunpack.c.l.b16 %v2093
        %v2117 = vunpack.c.l.b16 %v2094
        %v2118 = vunpack.c.l.b16 %v2095
        %v2119 = vunpack.c.l.b16 %v2096
        %v2120 = vunpack.c.l.b16 %v2097
        %v2121 = vunpack.c.l.b16 %v2098
        %v2122 = vunpack.c.l.b16 %v2099
        %v2123 = vunpack.c.l.b16 %v2100
        %v2124 = vpack.c.b16 %v2117, %v2116
        %v2125 = vpack.c.b16 %v2119, %v2118
        %v2126 = vpack.c.b16 %v2121, %v2120
        %v2127 = vpack.c.b16 %v2123, %v2122
        %vm2132 = vcmask 523264
        %v2134 = vsel %vm2132, %v2092, 0
        %2136 = vmatprep.subr.bf16.mxu0 0
        %2137 = vmatpush1.bf16.msra.mxu0 0
        %2138 = vmatprep.subr.bf16.mxu0 0
        %2139 = vmatpush1.bf16.msra.mxu0 0
        %2140 = vmatprep.subr.bf16.mxu0 0
        %2141 = vmatpush1.bf16.msra.mxu0 0
        %2142 = vmatprep.subr.bf16.mxu0 0
        %2143 = vmatpush1.bf16.msra.mxu0 0
        %2144 = vmatprep.subr.bf16.mxu0 0
        %2145 = vmatpush1.bf16.msra.mxu0 %v2127
        %2146 = vmatprep.subr.bf16.mxu0 0
        %2147 = vmatpush1.bf16.msra.mxu0 %v2126
        %2148 = vmatprep.subr.bf16.mxu0 0
        %2149 = vmatpush1.bf16.msra.mxu0 %v2125
        %2150 = vmatprep.subr.bf16.mxu0 0
        %2151 = vmatpush1.bf16.msra.mxu0 %v2124
        %2152 = vmatprep.subr.bf16.mxu0 0
        %2153 = vmatpush2.bf16.msra.mxu0 0
        %2154 = vmatprep.subr.bf16.mxu0 0
        %2155 = vmatpush2.bf16.msra.mxu0 0
        %2156 = vmatprep.subr.bf16.mxu0 0
        %2157 = vmatpush2.bf16.msra.mxu0 0
        %2158 = vmatprep.subr.bf16.mxu0 0
        %2159 = vmatpush2.bf16.msra.mxu0 0
        %2160 = vmatprep.subr.bf16.mxu0 0
        %2161 = vmatpush2.bf16.msra.mxu0 0
        %2162 = vmatprep.subr.bf16.mxu0 0
        %2163 = vmatpush2.bf16.msra.mxu0 0
        %2164 = vmatprep.subr.bf16.mxu0 0
        %2165 = vmatpush2.bf16.msra.mxu0 0
        %2166 = vmatprep.subr.bf16.mxu0 0
        %2167 = vmatpush2.bf16.msra.mxu0 0
        %2168 = vmatprep.mubr.bf16.mxu0 0
        %2169 = vmatmul.mubr.bf16.gmra.mxu0 %v2134
        %v2170 = vpop.f32.mrf.mxu0
        %v2171 = vadd.f32 %v2106, %v2170
        %v2172 = vpop.f32.mrf.mxu0
        %v2173 = vpop.f32.mrf.mxu0
        %v2174 = vpop.f32.mrf.mxu0
        %2175 = vdwg.mxu0
        %v2176 = vadd.f32 %v2023, %v2171
        %v2177 = vld [vmem:[%s16] sm:$0x1]
        %v2178 = vld [vmem:[%s17] sm:$0x1]
        %v2179 = vsel %vm735, %v2176, 0.0
        %2180 = vadd.xlane.f32.xlu0 %v2179
        %v2181 = vpop.xlane.xlu0 %2180
        %v2182 = vmul.f32 %v2181, %v1997
        %v2183 = vmul.f32 %v2176, %v2176
        %v2184 = vsel %vm735, %v2183, 0.0
        %2185 = vadd.xlane.f32.xlu0 %v2184
        %v2186 = vpop.xlane.xlu0 %2185
        %v2187 = vmul.f32 %v2186, %v1997
        %v2188 = vmul.f32 %v2182, %v2182
        %v2189 = vsub.f32 %v2187, %v2188
        %v2190 = vsub.f32 %v2176, %v2182
        %v2191 = vadd.f32 %v2189, 1e-05
        %v2192 = vrsqrt.pop %v2191
        %v2193 = vmul.f32 %v2190, %v2192
        %v2195 = vlaneseq
        %v2196 = vshrl.u32 %v2195, 7
        %v2197 = vsub.s32 0, %v2196
        %v2198 = vrot.slane %v2177, %v2197
        %v2200 = vmul.f32 %v2193, %v2198
        %v2202 = vlaneseq
        %v2203 = vshrl.u32 %v2202, 7
        %v2204 = vsub.s32 0, %v2203
        %v2205 = vrot.slane %v2178, %v2204
        %v2207 = vadd.f32 %v2200, %v2205
        %2208 = vst.msk [vmem:[%s695] sm:$0xff] %vm735, %v2207
        %s2209 = sand.u32 %s448, 1
        %s2210 = scalar_lea.sflag [#allocation4], %s2209
        %s2211 = sand.u32 %s448, 1
        %s2212 = smul.addr %s2211, 8
        %s2213 = scalar_lea.vmem [#allocation14], %s2212
        // Predicated region
        $region121: #{tpu_custom_call.1} parent=91 // pred_check
          %p2214 = pneg %p458
        $region122: #{tpu_custom_call.1} parent=91 // pred_check_branch
          %2216 = sbr.rel (%p2214) target = $region124
        $region123: #{tpu_custom_call.1} parent=91 // pred_region
          %s2218 = ssub.s32 128, 128
          %2219 = vsyncadd %s2210, %s2218
          %s2220 = sadd.s32 %s41, %s40
          %s2221 = smul.addr %s2220, 128
          %s2222 = scalar_lea.hbm %s18, %s2221
          %s2224 = sshll.u32 %s2213, 4
          %s2225 = int_to_ptr.vmem [resolvable:$true] %s2224
          %2227 = dma.vmem_to_hbm [thread:$0]  %s2225, 128, %s2222, %s2210
        $region124: #{tpu_custom_call.1} parent=91 // pred_fallthru
          _
      $region92: #{tpu_custom_call.1} parent=5 // pred_fallthru
        _
      %p2228 = scmp.le.s32.totalorder 2, %s31
      // Predicated region
      $region125: #{tpu_custom_call.1} parent=5 // pred_check
        %p2229 = pneg %p2228
      $region126: #{tpu_custom_call.1} parent=5 // pred_check_branch
        %2231 = sbr.rel (%p2229) target = $region128
      $region127: #{tpu_custom_call.1} parent=5 // pred_region
        %s2232 = ssub.s32 %s31, 2
        // Predicated region
        $region129: #{tpu_custom_call.1} parent=127 // pred_check
          %p2233 = pneg %p464
        $region130: #{tpu_custom_call.1} parent=127 // pred_check_branch
          %2235 = sbr.rel (%p2233) target = $region132
        $region131: #{tpu_custom_call.1} parent=127 // pred_region
          %s2236 = sand.u32 %s449, 1
          %s2237 = scalar_lea.sflag [#allocation4], %s2236
          %s2238 = sand.u32 %s449, 1
          %s2239 = smul.addr %s2238, 8
          %s2240 = scalar_lea.vmem [#allocation14], %s2239
          %2241 = dma.done %s2237, 128
        $region132: #{tpu_custom_call.1} parent=127 // pred_fallthru
          _
      $region128: #{tpu_custom_call.1} parent=5 // pred_fallthru
        _
    $region6: #{tpu_custom_call.1} parent=1 // loop_footer
      %s35 = sadd.s32 1, %s31
    $region7: #{tpu_custom_call.1} parent=1 // loop_footer_branch
      %30 = sbr.rel target = $region3
    $region8: #{tpu_custom_call.1} parent=1 // loop_exit
      _
    %2242 = vsyncpa [#allocation3], 1
    %s2243 = scalar_lea.sflag [#allocation3], 1
    %2244 = vsyncpa %s2243, 1
    %2245 = vsyncpa [#allocation6], 1
    %2246 = vsyncpa [#allocation9], 1
    %2247 = vsyncpa [#allocation12], 1
    %2248 = vsyncpa [#allocation4], 1
    %s2249 = scalar_lea.sflag [#allocation4], 1
    %2250 = vsyncpa %s2249, 1

</llo_original>
